<compile_context>
chip_gen: v7x
topology: tpu7x:2x2x1
jax: 0.10.0
libtpu: 0.0.40
codegen_flags: <defaults>
</compile_context>

<pallas_src>
import jax
import jax.numpy as jnp
import numpy as np
from jax.experimental import pallas as pl
from jax.experimental.pallas import tpu as pltpu

# ---- dims implied by DiseaseDetectorSecondStage.__init__ / forward ----
N_REG = 5          # forward slices the width-1120 image into 5 width-224 regions
D_VIS = 768        # frozen backbone CLS feature dim  (Linear(768 + 14, 96))
D_PRED = 14        # first_stage_pred feature dim
D_HID = 96         # Linear(782, 96) / BatchNorm1d(96)
D_OUT = 3          # Linear(96, 3)  / BatchNorm1d(3)
BN_EPS = 1e-5

D_HID_PAD = 128    # lane-padded hidden width  (96 -> 128)
D_OUT_PAD = 128    # lane-padded output width  (3 -> 128); sliced back in wrapper
TN = 384           # D_VIS tile (parallel axis; 2 tiles -> v7x 2-TC sharding)


def _round_up(x, m):
    return (x + m - 1) // m * m


# -------------------- kernel 1: region "visual extractor" matmul -------------
def _extractor_kernel(reg_ref, w_ref, b_ref, feat_ref, acc_ref):
    k = pl.program_id(1)

    @pl.when(k == 0)
    def _():
        acc_ref[...] = jnp.zeros_like(acc_ref)

    # bf16 x bf16 -> f32 accumulation on the MXU.
    acc_ref[...] += jnp.dot(reg_ref[...], w_ref[...],
                            preferred_element_type=jnp.float32)

    @pl.when(k == pl.num_programs(1) - 1)
    def _():
        feat_ref[...] = acc_ref[...] + b_ref[...]


# -------------------- kernel 2: classification head --------------------------
def _head_kernel(feat_ref, pred_ref, w1v_ref, w1p_ref, b1_ref,
                 w2_ref, b2_ref, bn2s_ref, bn2b_ref, out_ref):
    vis = jnp.mean(feat_ref[...], axis=0)            # mean CLS feature over regions
    # Linear(768+14, 96) on concat([vis, pred]) == vis @ W1v + pred @ W1p + b1
    h = (jnp.dot(vis, w1v_ref[...], preferred_element_type=jnp.float32)
         + jnp.dot(pred_ref[...], w1p_ref[...], preferred_element_type=jnp.float32)
         + b1_ref[...])
    h = jnp.maximum(h, 0.0)                          # F.relu
    # BatchNorm1d(96) (eval) folded into w2/b2; Dropout(p=0.4) = identity (eval)
    z = jnp.dot(h, w2_ref[...], preferred_element_type=jnp.float32) + b2_ref[...]
    z = jnp.maximum(z, 0.0)                          # F.relu
    out_ref[...] = z * bn2s_ref[...] + bn2b_ref[...]  # BatchNorm1d(3), eval mode


def disease_detector_second_stage(x, first_stage_pred, params, *, tk_target=2048):
    """x: (B, C, H, W=N_REG*Wr) NCHW float32; first_stage_pred: (B, 14)."""
    B, C, H, W = x.shape
    Wr = W // N_REG
    P = C * H * Wr

    B_pad = _round_up(B, 8)
    M = N_REG * B_pad
    TK = min(_round_up(P, 128), tk_target)           # raise tk_target on v5e/v6e
    P_pad = _round_up(P, TK)
    grid = (D_VIS // TN, P_pad // TK)

    # Fold the region split into one reshape+transpose that directly produces the
    # (N_REG*B_pad, P_pad) matmul operand (no per-region slice + stack + reshape).
    regions = jnp.transpose(x.reshape(B, C, H, N_REG, Wr), (3, 0, 1, 2, 4))
    regions = regions.reshape(N_REG, B, P)
    regions = jnp.pad(regions, ((0, 0), (0, B_pad - B), (0, P_pad - P)))
    regions = regions.reshape(M, P_pad).astype(jnp.bfloat16)

    w_ext = jnp.pad(params["w_ext"], ((0, P_pad - P), (0, 0))).astype(jnp.bfloat16)
    b_ext = params["b_ext"].astype(jnp.float32)

    # double-buffered inputs/outputs + f32 accumulator, with headroom; capped so it
    # stays safe on v7x's 64 MiB VMEM.
    vmem_est = (2 * (M * TK * 2 + TK * TN * 2 + TN * 4 + M * TN * 4)
                + M * TN * 4)
    vmem_limit = int(min(48 * 1024 * 1024, max(16 * 1024 * 1024, 3 * vmem_est)))

    feats = pl.pallas_call(
        _extractor_kernel,
        out_shape=jax.ShapeDtypeStruct((M, D_VIS), jnp.float32),
        grid_spec=pltpu.PrefetchScalarGridSpec(
            num_scalar_prefetch=0,
            grid=grid,                                    # (N tiles, K tiles)
            in_specs=[
                pl.BlockSpec((M, TK), lambda n, k: (0, k)),    # regions: stream K
                pl.BlockSpec((TK, TN), lambda n, k: (k, n)),   # w_ext: K x N tiles
                pl.BlockSpec((1, TN), lambda n, k: (0, n)),    # b_ext
            ],
            out_specs=pl.BlockSpec((M, TN), lambda n, k: (0, n)),
            scratch_shapes=[pltpu.VMEM((M, TN), jnp.float32)],
        ),
        compiler_params=pltpu.CompilerParams(
            dimension_semantics=("parallel", "arbitrary"),
            vmem_limit_bytes=vmem_limit),
    )(regions, w_ext, b_ext)

    # ---- head on lane-padded tensors ----
    feats = feats.reshape(N_REG, B_pad, D_VIS)        # free contiguous reshape
    pred = jnp.pad(first_stage_pred.astype(jnp.float32), ((0, B_pad - B), (0, 0)))

    w1v = jnp.pad(params["w1v"], ((0, 0), (0, D_HID_PAD - D_HID)))
    w1p = jnp.pad(params["w1p"], ((0, 0), (0, D_HID_PAD - D_HID)))
    b1 = jnp.pad(params["b1"], ((0, 0), (0, D_HID_PAD - D_HID)))
    # fold BatchNorm1d(96) (eval) into linear2:  z = relu(h)*s1+sh1 @ W2 + b2
    w2_eff = params["bn1_scale"].T * params["w2"]                     # (96, 3)
    b2_eff = params["b2"] + params["bn1_shift"] @ params["w2"]        # (1, 3)
    w2_eff = jnp.pad(w2_eff, ((0, D_HID_PAD - D_HID), (0, D_OUT_PAD - D_OUT)))
    b2_eff = jnp.pad(b2_eff, ((0, 0), (0, D_OUT_PAD - D_OUT)))
    bn2s = jnp.pad(params["bn2_scale"], ((0, 0), (0, D_OUT_PAD - D_OUT)),
                   constant_values=1.0)
    bn2b = jnp.pad(params["bn2_shift"], ((0, 0), (0, D_OUT_PAD - D_OUT)))

    def full(shape):
        return pl.BlockSpec(shape, lambda i, _n=len(shape): (0,) * _n)

    out = pl.pallas_call(
        _head_kernel,
        out_shape=jax.ShapeDtypeStruct((B_pad, D_OUT_PAD), jnp.float32),
        grid_spec=pltpu.PrefetchScalarGridSpec(
            num_scalar_prefetch=0,
            grid=(1,),
            in_specs=[
                full((N_REG, B_pad, D_VIS)),
                full((B_pad, D_PRED)),
                full((D_VIS, D_HID_PAD)),
                full((D_PRED, D_HID_PAD)),
                full((1, D_HID_PAD)),
                full((D_HID_PAD, D_OUT_PAD)),
                full((1, D_OUT_PAD)),
                full((1, D_OUT_PAD)),
                full((1, D_OUT_PAD)),
            ],
            out_specs=full((B_pad, D_OUT_PAD)),
        ),
        compiler_params=pltpu.CompilerParams(
            dimension_semantics=("arbitrary",)),
    )(feats, pred, w1v, w1p, b1, w2_eff, b2_eff, bn2s, bn2b)

    return out[:B, :D_OUT]


def init_params(key, pixels_per_region):
    """Deterministic parameter init (PyTorch-Linear-style uniform bounds)."""
    ks = jax.random.split(key, 5)

    def linear(k, fan_in, fan_out):
        bound = 1.0 / np.sqrt(fan_in)
        kw, kb = jax.random.split(k)
        w = jax.random.uniform(kw, (fan_in, fan_out), jnp.float32, -bound, bound)
        b = jax.random.uniform(kb, (1, fan_out), jnp.float32, -bound, bound)
        return w, b

    w_ext, b_ext = linear(ks[0], pixels_per_region, D_VIS)   # frozen synthetic backbone
    w1, b1 = linear(ks[1], D_VIS + D_PRED, D_HID)            # nn.Linear(782, 96)
    w2, b2 = linear(ks[2], D_HID, D_OUT)                     # nn.Linear(96, 3)

    def bn_affine(k, dim):
        kg, kb, km, kv = jax.random.split(k, 4)
        gamma = jax.random.uniform(kg, (1, dim), jnp.float32, 0.5, 1.5)
        beta = jax.random.uniform(kb, (1, dim), jnp.float32, -0.5, 0.5)
        running_mean = jax.random.uniform(km, (1, dim), jnp.float32, -0.5, 0.5)
        running_var = jax.random.uniform(kv, (1, dim), jnp.float32, 0.5, 1.5)
        scale = gamma / jnp.sqrt(running_var + BN_EPS)
        shift = beta - running_mean * scale
        return scale, shift

    bn1_scale, bn1_shift = bn_affine(ks[3], D_HID)
    bn2_scale, bn2_shift = bn_affine(ks[4], D_OUT)

    return dict(w_ext=w_ext, b_ext=b_ext,
                w1v=w1[:D_VIS], w1p=w1[D_VIS:], b1=b1,
                bn1_scale=bn1_scale, bn1_shift=bn1_shift,
                w2=w2, b2=b2,
                bn2_scale=bn2_scale, bn2_shift=bn2_shift)


def reference(x, pred, params):
    """Plain-JAX reference (matches the kernel's bf16 quantization of the
    streaming operands so the check exercises kernel logic, not rounding)."""
    B, C, H, W = x.shape
    Wr = W // N_REG
    P = C * H * Wr
    regions = jnp.stack(
        [x[:, :, :, r * Wr:(r + 1) * Wr].reshape(B, P) for r in range(N_REG)], 0)
    regions = regions.astype(jnp.bfloat16).astype(jnp.float32)
    w_ext = params["w_ext"].astype(jnp.bfloat16).astype(jnp.float32)
    feats = jnp.einsum('rbp,pd->rbd', regions, w_ext) + params["b_ext"]
    vis = feats.mean(0)
    combined = jnp.concatenate([vis, pred], axis=-1)
    w1 = jnp.concatenate([params["w1v"], params["w1p"]], axis=0)
    h = jnp.maximum(combined @ w1 + params["b1"], 0.0)
    h = h * params["bn1_scale"] + params["bn1_shift"]
    z = jnp.maximum(h @ params["w2"] + params["b2"], 0.0)
    z = z * params["bn2_scale"] + params["bn2_shift"]
    return z


if __name__ == "__main__":
    key = jax.random.PRNGKey(0)
    kx, kp, kparam = jax.random.split(key, 3)

    # small shapes consistent with the module: 5 width regions, 14-dim stage-1 preds
    B, C, H, Wr = 2, 3, 16, 16
    x = jax.random.normal(kx, (B, C, H, N_REG * Wr), jnp.float32)
    first_stage_pred = jax.random.normal(kp, (B, D_PRED), jnp.float32)

    params = init_params(kparam, C * H * Wr)

    out = disease_detector_second_stage(x, first_stage_pred, params)
    out = jax.block_until_ready(out)

    ref = reference(x, first_stage_pred, params)
    np.testing.assert_allclose(np.asarray(out), np.asarray(ref),
                               rtol=2e-3, atol=2e-3)
    assert out.shape == (B, D_OUT)
    print("KERNEL_OK")
</pallas_src>

<mosaic_0001>
module attributes {stable_mosaic.version = 11 : i64} {
  func.func @_extractor_kernel(%arg0: i32, %arg1: i32, %arg2: memref<40x768xbf16, #tpu.memory_space<vmem>>, %arg3: memref<768x384xbf16, #tpu.memory_space<vmem>>, %arg4: memref<1x384xf32, #tpu.memory_space<vmem>>, %arg5: memref<40x384xf32, #tpu.memory_space<vmem>>, %arg6: memref<40x384xf32, #tpu.memory_space<vmem>>) attributes {dimension_semantics = [#tpu.dimension_semantics<parallel>, #tpu.dimension_semantics<arbitrary>], iteration_bounds = array<i64: 2, 1>, scalar_prefetch = 0 : i64, scratch_operands = 1 : i64, tpu.core_type = #tpu.core_type<tc>, window_params = [{transform_indices = @transform_0, window_bounds = array<i64: 40, 768>}, {transform_indices = @transform_1, window_bounds = array<i64: 768, 384>}, {transform_indices = @transform_2, window_bounds = array<i64: 1, 384>}, {transform_indices = @transform_3, window_bounds = array<i64: 40, 384>}]} {
    %c0_i32 = arith.constant 0 : i32
    %0 = arith.cmpi eq, %arg1, %c0_i32 : i32
    %1 = arith.extui %0 : i1 to i32
    %c0_i32_0 = arith.constant 0 : i32
    %2 = arith.cmpi ne, %1, %c0_i32_0 : i32
    scf.if %2 {
      %cst_10 = arith.constant 0.000000e+00 : f32
      %12 = vector.broadcast %cst_10 : f32 to vector<40x384xf32>
      %c0_11 = arith.constant 0 : index
      %c0_12 = arith.constant 0 : index
      %13 = vector.load %arg6[%c0_11, %c0_12] : memref<40x384xf32, #tpu.memory_space<vmem>>, vector<40x384xf32>
      tpu.vector_store %arg6[%c0_11, %c0_12], %12 {strides = array<i32>} : memref<40x384xf32, #tpu.memory_space<vmem>>, vector<40x384xf32>,
    } else {
    }
    %c0 = arith.constant 0 : index
    %c0_1 = arith.constant 0 : index
    %3 = vector.load %arg6[%c0, %c0_1] : memref<40x384xf32, #tpu.memory_space<vmem>>, vector<40x384xf32>
    %c0_2 = arith.constant 0 : index
    %c0_3 = arith.constant 0 : index
    %4 = vector.load %arg2[%c0_2, %c0_3] : memref<40x768xbf16, #tpu.memory_space<vmem>>, vector<40x768xbf16>
    %c0_4 = arith.constant 0 : index
    %c0_5 = arith.constant 0 : index
    %5 = vector.load %arg3[%c0_4, %c0_5] : memref<768x384xbf16, #tpu.memory_space<vmem>>, vector<768x384xbf16>
    %cst = arith.constant dense<0.000000e+00> : vector<40x384xf32>
    %6 = tpu.matmul %4, %5, %cst {dimension_numbers = #tpu.dot_dimension_numbers<[1], [0], [0], [1], [0, 0, 1, 1], [], []>} : vector<40x768xbf16>, vector<768x384xbf16>, vector<40x384xf32> -> vector<40x384xf32>
    %7 = arith.addf %3, %6 : vector<40x384xf32>
    %c0_6 = arith.constant 0 : index
    %c0_7 = arith.constant 0 : index
    %8 = vector.load %arg6[%c0_6, %c0_7] : memref<40x384xf32, #tpu.memory_space<vmem>>, vector<40x384xf32>
    tpu.vector_store %arg6[%c0_6, %c0_7], %7 {strides = array<i32>} : memref<40x384xf32, #tpu.memory_space<vmem>>, vector<40x384xf32>,
    %c0_i32_8 = arith.constant 0 : i32
    %9 = arith.cmpi eq, %arg1, %c0_i32_8 : i32
    %10 = arith.extui %9 : i1 to i32
    %c0_i32_9 = arith.constant 0 : i32
    %11 = arith.cmpi ne, %10, %c0_i32_9 : i32
    scf.if %11 {
      %c0_10 = arith.constant 0 : index
      %c0_11 = arith.constant 0 : index
      %12 = vector.load %arg6[%c0_10, %c0_11] : memref<40x384xf32, #tpu.memory_space<vmem>>, vector<40x384xf32>
      %c0_12 = arith.constant 0 : index
      %c0_13 = arith.constant 0 : index
      %13 = vector.load %arg4[%c0_12, %c0_13] : memref<1x384xf32, #tpu.memory_space<vmem>>, vector<1x384xf32>
      %14 = vector.broadcast %13 : vector<1x384xf32> to vector<40x384xf32>
      %15 = arith.addf %12, %14 : vector<40x384xf32>
      %c0_14 = arith.constant 0 : index
      %c0_15 = arith.constant 0 : index
      %16 = vector.load %arg5[%c0_14, %c0_15] : memref<40x384xf32, #tpu.memory_space<vmem>>, vector<40x384xf32>
      tpu.vector_store %arg5[%c0_14, %c0_15], %15 {strides = array<i32>} : memref<40x384xf32, #tpu.memory_space<vmem>>, vector<40x384xf32>,
    } else {
    }
    return
  }
  func.func @transform_0(%arg0: i32, %arg1: i32) -> (i32, i32) {
    %c0_i32 = arith.constant 0 : i32
    %c0_i32_0 = arith.constant 0 : i32
    return %c0_i32, %arg1 : i32, i32
  }
  func.func @transform_1(%arg0: i32, %arg1: i32) -> (i32, i32) {
    %c0_i32 = arith.constant 0 : i32
    return %arg1, %arg0 : i32, i32
  }
  func.func @transform_2(%arg0: i32, %arg1: i32) -> (i32, i32) {
    %c0_i32 = arith.constant 0 : i32
    %c0_i32_0 = arith.constant 0 : i32
    return %c0_i32, %arg0 : i32, i32
  }
  func.func @transform_3(%arg0: i32, %arg1: i32) -> (i32, i32) {
    %c0_i32 = arith.constant 0 : i32
    %c0_i32_0 = arith.constant 0 : i32
    return %c0_i32, %arg0 : i32, i32
  }
}

</mosaic_0001>

<llo_original>
// kernel: tpu_custom_call.1
$region0: #{tpu_custom_call.1}
  #allocation0 [shape = 'u32[]', space=smem, size = 0x4, offset = 0x4, fixed_abs, tag = 'smem constant byte address 0x4 - core index']
  #allocation1 [shape = 'u32[144,128]{1,0:T(1,128)}', space=vmem, size = 0x12000, scoped, tag = 'internal scratch']
  #allocation2 [shape = 'f32[40,384]{1,0:T(8,128)}', space=vmem, size = 0xf000, scoped, tag = 'scratch operand']
  %s0 = inlined_call_operand.hbm [shape: bf16[40,768], index: 0, kind: input, shape index: {}]
  %s1 = inlined_call_operand.hbm [shape: bf16[768,768], index: 1, kind: input, shape index: {}]
  %s2 = inlined_call_operand.hbm [shape: f32[1,768], index: 2, kind: input, shape index: {}]
  %s3 = inlined_call_operand.hbm [shape: f32[40,768], index: 3, kind: output, shape index: {}]
  %s4 = sld [smem:[#allocation0]]
  $region65: #{tpu_custom_call.1} parent=0
    _
  %s6 = ssub.s32 1, %s4
  %s7 = scalar_select 0, %s6, %s4
  $region1: #{tpu_custom_call.1} parent=0
    #allocation3 [shape = 'u8[61440]{0}', space=vmem, size = 0xf000, scoped, tag = 'input window, operand 0, single buffered']
    #allocation4 [shape = 's32[2]{0}', space=sflag, size = 0x8, scoped, tag = 'scoped memory for tpu_custom_call.1']
    #allocation5 [shape = 's32[2]{0}', space=sflag, size = 0x8, scoped, tag = 'scoped memory for tpu_custom_call.1']
    #allocation6 [shape = 'u8[1179648]{0}', space=vmem, size = 0x120000, scoped, tag = 'input window, operand 1']
    #allocation7 [shape = 's32[2]{0}', space=sflag, size = 0x8, scoped, tag = 'scoped memory for tpu_custom_call.1']
    #allocation8 [shape = 'u8[3072]{0}', space=vmem, size = 0xc00, scoped, tag = 'input window, operand 2']
    #allocation9 [shape = 'u8[122880]{0}', space=vmem, size = 0x1e000, scoped, tag = 'output window, operand 0']
    %8 = vsyncpa [#allocation4], 0
    %9 = vsyncpa [#allocation7], 0
    %s10 = scalar_lea.sflag [#allocation7], 1
    %11 = vsyncpa %s10, 0
    %12 = vsyncpa [#allocation5], 0
    %s13 = scalar_lea.sflag [#allocation5], 1
    %14 = vsyncpa %s13, 0
    loop: start=0, step=1, limit=4
    $region2: #{tpu_custom_call.1} parent=1 // loop_pre_header
      _
    $region3: #{tpu_custom_call.1} parent=1 // loop_header
      %s16 = sphi 0, %s20
      %p17 = scmp.ge.s32.totalorder %s16, 4
      %s23 = sphi 0, %s35
      %s24 = sphi 0, %s31
      %s25 = sphi 0, %s23
      %s26 = sphi 0, %s24
      %s27 = sphi 0, %s25
      %s28 = sphi 0, %s26
      %s38 = sphi 0, %s40
      %s41 = sphi 0, %s38
      %s42 = sphi 0, %s41
      %s58 = sphi 0, %s42
      %s66 = sphi 0, %s68
      %s69 = sphi 0, %s66
      %s70 = sphi 0, %s69
      %s86 = sphi 0, %s70
      %s92 = sphi 0, %s94
      %s95 = sphi 0, %s92
      %s96 = sphi 0, %s95
      %s112 = sphi 0, %s96
      %s118 = sphi 0, %s120
      %s121 = sphi 0, %s118
      %s122 = sphi 0, %s121
      %s138 = sphi 0, %s122
    $region4: #{tpu_custom_call.1} parent=1 // loop_header_branch
      %19 = sbr.rel (%p17) target = $region8
    $region5: #{tpu_custom_call.1} parent=1 // loop_body
      %s21 = ssub.s32 %s16, 1
      %s22 = ssub.s32 %s16, 2
      %s29 = sadd.s32 1, %s24
      %p30 = scmp.ge.s32.totalorder %s29, 1
      %s31 = scalar_select %p30, 0, %s29
      %s32 = sadd.s32 1, %s23
      %s33 = scalar_select %p30, %s32, %s23
      %p34 = scmp.ge.s32.totalorder %s33, 2
      %s35 = scalar_select %p34, 0, %s33
      %s36 = ssub.s32 %s24, %s31
      %p37 = scmp.eq.s32.totalorder %s36, 0
      %s39 = sadd.s32 %s38, 1
      %s40 = scalar_select %p37, %s38, %s39
      %p43 = pneg %p37
      %p44 = scmp.eq.s32.totalorder %s16, 1
      %p45 = por %p43, %p44
      %p46 = scmp.ne.s32.totalorder %s38, %s41
      %p47 = scmp.eq.s32.totalorder %s16, 0
      %p48 = por %p46, %p47
      %p49 = scmp.ne.s32.totalorder %s38, %s41
      %p50 = scmp.eq.s32.totalorder %s21, 1
      %p51 = por %p49, %p50
      %p52 = scmp.ne.s32.totalorder %s41, %s42
      %p53 = scmp.eq.s32.totalorder %s21, 0
      %p54 = por %p52, %p53
      %p55 = scmp.ne.s32.totalorder %s41, %s42
      %p56 = scmp.eq.s32.totalorder %s22, 1
      %p57 = por %p55, %p56
      %p59 = scmp.ne.s32.totalorder %s42, %s58
      %p60 = scmp.eq.s32.totalorder %s22, 0
      %p61 = por %p59, %p60
      %s62 = ssub.s32 %s24, %s31
      %s63 = ssub.s32 %s23, %s35
      %s64 = sor.u32 %s62, %s63
      %p65 = scmp.eq.s32.totalorder %s64, 0
      %s67 = sadd.s32 %s66, 1
      %s68 = scalar_select %p65, %s66, %s67
      %p71 = pneg %p65
      %p72 = scmp.eq.s32.totalorder %s16, 1
      %p73 = por %p71, %p72
      %p74 = scmp.ne.s32.totalorder %s66, %s69
      %p75 = scmp.eq.s32.totalorder %s16, 0
      %p76 = por %p74, %p75
      %p77 = scmp.ne.s32.totalorder %s66, %s69
      %p78 = scmp.eq.s32.totalorder %s21, 1
      %p79 = por %p77, %p78
      %p80 = scmp.ne.s32.totalorder %s69, %s70
      %p81 = scmp.eq.s32.totalorder %s21, 0
      %p82 = por %p80, %p81
      %p83 = scmp.ne.s32.totalorder %s69, %s70
      %p84 = scmp.eq.s32.totalorder %s22, 1
      %p85 = por %p83, %p84
      %p87 = scmp.ne.s32.totalorder %s70, %s86
      %p88 = scmp.eq.s32.totalorder %s22, 0
      %p89 = por %p87, %p88
      %s90 = ssub.s32 %s23, %s35
      %p91 = scmp.eq.s32.totalorder %s90, 0
      %s93 = sadd.s32 %s92, 1
      %s94 = scalar_select %p91, %s92, %s93
      %p97 = pneg %p91
      %p98 = scmp.eq.s32.totalorder %s16, 1
      %p99 = por %p97, %p98
      %p100 = scmp.ne.s32.totalorder %s92, %s95
      %p101 = scmp.eq.s32.totalorder %s16, 0
      %p102 = por %p100, %p101
      %p103 = scmp.ne.s32.totalorder %s92, %s95
      %p104 = scmp.eq.s32.totalorder %s21, 1
      %p105 = por %p103, %p104
      %p106 = scmp.ne.s32.totalorder %s95, %s96
      %p107 = scmp.eq.s32.totalorder %s21, 0
      %p108 = por %p106, %p107
      %p109 = scmp.ne.s32.totalorder %s95, %s96
      %p110 = scmp.eq.s32.totalorder %s22, 1
      %p111 = por %p109, %p110
      %p113 = scmp.ne.s32.totalorder %s96, %s112
      %p114 = scmp.eq.s32.totalorder %s22, 0
      %p115 = por %p113, %p114
      %s116 = ssub.s32 %s23, %s35
      %p117 = scmp.eq.s32.totalorder %s116, 0
      %s119 = sadd.s32 %s118, 1
      %s120 = scalar_select %p117, %s118, %s119
      %p123 = pneg %p117
      %p124 = scmp.eq.s32.totalorder %s16, 1
      %p125 = por %p123, %p124
      %p126 = scmp.ne.s32.totalorder %s118, %s121
      %p127 = scmp.eq.s32.totalorder %s16, 0
      %p128 = por %p126, %p127
      %p129 = scmp.ne.s32.totalorder %s118, %s121
      %p130 = scmp.eq.s32.totalorder %s21, 1
      %p131 = por %p129, %p130
      %p132 = scmp.ne.s32.totalorder %s121, %s122
      %p133 = scmp.eq.s32.totalorder %s21, 0
      %p134 = por %p132, %p133
      %p135 = scmp.ne.s32.totalorder %s121, %s122
      %p136 = scmp.eq.s32.totalorder %s22, 1
      %p137 = por %p135, %p136
      %p139 = scmp.ne.s32.totalorder %s122, %s138
      %p140 = scmp.eq.s32.totalorder %s22, 0
      %p141 = por %p139, %p140
      %p142 = scmp.le.s32.totalorder 1, %s16
      %p143 = scmp.lt.s32.totalorder %s16, 3
      %p144 = pnand %p142, %p143
      %p145 = pneg %p144
      // Predicated region
      $region9: #{tpu_custom_call.1} parent=5 // pred_check
        _
      $region10: #{tpu_custom_call.1} parent=5 // pred_check_branch
        %147 = sbr.rel (%p144) target = $region12
      $region11: #{tpu_custom_call.1} parent=5 // pred_region
        %s148 = ssub.s32 %s16, 1
        // Predicated region
        $region13: #{tpu_custom_call.1} parent=11 // pred_check
          %p149 = pneg %p54
        $region14: #{tpu_custom_call.1} parent=11 // pred_check_branch
          %151 = sbr.rel (%p149) target = $region16
        $region15: #{tpu_custom_call.1} parent=11 // pred_region
          %s152 = smul.u32 6, %s26
          %s154 = ssub.s32 1920, 1920
          %155 = vsyncadd [#allocation4], %s154
          %s156 = smul.addr %s152, 64
          %s157 = scalar_lea.hbm %s0, %s156
          %s158 = sshll.u32 [#allocation3], 4
          %s159 = int_to_ptr.vmem [resolvable:$true] %s158
          %164 = dma.hbm_to_vmem [thread:$0]  %s157, 1920, %s159, [#allocation4], 384, 384, 24
        $region16: #{tpu_custom_call.1} parent=11 // pred_fallthru
          _
      $region12: #{tpu_custom_call.1} parent=5 // pred_fallthru
        _
      %p165 = scmp.lt.s32.totalorder %s16, 2
      // Predicated region
      $region17: #{tpu_custom_call.1} parent=5 // pred_check
        %p166 = pneg %p165
      $region18: #{tpu_custom_call.1} parent=5 // pred_check_branch
        %168 = sbr.rel (%p166) target = $region20
      $region19: #{tpu_custom_call.1} parent=5 // pred_region
        // Predicated region
        $region21: #{tpu_custom_call.1} parent=19 // pred_check
          %p169 = pneg %p76
        $region22: #{tpu_custom_call.1} parent=19 // pred_check_branch
          %171 = sbr.rel (%p169) target = $region24
        $region23: #{tpu_custom_call.1} parent=19 // pred_region
          %s172 = sand.u32 %s16, 1
          %s173 = scalar_lea.sflag [#allocation7], %s172
          %s174 = sand.u32 %s66, 1
          %s175 = smul.addr %s174, 1152
          %s176 = scalar_lea.vmem [#allocation6], %s175
          %s177 = smul.u32 96, %s24
          %s178 = smul.u32 3, %s23
          %s180 = ssub.s32 18432, 18432
          %181 = vsyncadd %s173, %s180
          %s182 = smul.addr %s177, 6
          %s183 = sadd.s32 %s178, %s182
          %s184 = smul.addr %s183, 64
          %s185 = scalar_lea.hbm %s1, %s184
          %s186 = sshll.u32 %s176, 4
          %s187 = int_to_ptr.vmem [resolvable:$true] %s186
          %192 = dma.hbm_to_vmem [thread:$0]  %s185, 18432, %s187, %s173, 384, 192, 12
        $region24: #{tpu_custom_call.1} parent=19 // pred_fallthru
          _
        // Predicated region
        $region25: #{tpu_custom_call.1} parent=19 // pred_check
          %p193 = pneg %p102
        $region26: #{tpu_custom_call.1} parent=19 // pred_check_branch
          %195 = sbr.rel (%p193) target = $region28
        $region27: #{tpu_custom_call.1} parent=19 // pred_region
          %s196 = sand.u32 %s16, 1
          %s197 = scalar_lea.sflag [#allocation7], %s196
          %s198 = sand.u32 %s92, 1
          %s199 = smul.addr %s198, 3
          %s200 = scalar_lea.vmem [#allocation8], %s199
          %s201 = smul.u32 3, %s23
          %s203 = ssub.s32 48, 48
          %204 = vsyncadd %s197, %s203
          %s205 = smul.addr %s201, 16
          %s206 = scalar_lea.hbm %s2, %s205
          %s208 = sshll.u32 %s200, 4
          %s209 = int_to_ptr.vmem [resolvable:$true] %s208
          %211 = dma.hbm_to_vmem [thread:$0]  %s206, 48, %s209, %s197
        $region28: #{tpu_custom_call.1} parent=19 // pred_fallthru
          _
      $region20: #{tpu_custom_call.1} parent=5 // pred_fallthru
        _
      %p212 = scmp.le.s32.totalorder 1, %s16
      %p213 = scmp.lt.s32.totalorder %s16, 3
      %p214 = pnand %p212, %p213
      %p215 = pneg %p214
      // Predicated region
      $region29: #{tpu_custom_call.1} parent=5 // pred_check
        _
      $region30: #{tpu_custom_call.1} parent=5 // pred_check_branch
        %217 = sbr.rel (%p214) target = $region32
      $region31: #{tpu_custom_call.1} parent=5 // pred_region
        %s218 = ssub.s32 %s16, 1
        // Predicated region
        $region33: #{tpu_custom_call.1} parent=31 // pred_check
          %p219 = pneg %p54
        $region34: #{tpu_custom_call.1} parent=31 // pred_check_branch
          %221 = sbr.rel (%p219) target = $region36
        $region35: #{tpu_custom_call.1} parent=31 // pred_region
          %222 = dma.done [#allocation4], 1920
        $region36: #{tpu_custom_call.1} parent=31 // pred_fallthru
          _
        %s223 = sand.u32 %s21, 1
        %s224 = scalar_lea.sflag [#allocation7], %s223
        %s225 = sand.u32 %s69, 1
        %s226 = smul.addr %s225, 1152
        %s227 = scalar_lea.vmem [#allocation6], %s226
        // Predicated region
        $region37: #{tpu_custom_call.1} parent=31 // pred_check
          %p228 = pneg %p82
        $region38: #{tpu_custom_call.1} parent=31 // pred_check_branch
          %230 = sbr.rel (%p228) target = $region40
        $region39: #{tpu_custom_call.1} parent=31 // pred_region
          %231 = dma.done %s224, 18432
        $region40: #{tpu_custom_call.1} parent=31 // pred_fallthru
          _
        %s232 = sand.u32 %s21, 1
        %s233 = scalar_lea.sflag [#allocation7], %s232
        %s234 = sand.u32 %s95, 1
        %s235 = smul.addr %s234, 3
        %s236 = scalar_lea.vmem [#allocation8], %s235
        // Predicated region
        $region41: #{tpu_custom_call.1} parent=31 // pred_check
          %p237 = pneg %p108
        $region42: #{tpu_custom_call.1} parent=31 // pred_check_branch
          %239 = sbr.rel (%p237) target = $region44
        $region43: #{tpu_custom_call.1} parent=31 // pred_region
          %240 = dma.done %s233, 48
        $region44: #{tpu_custom_call.1} parent=31 // pred_fallthru
          _
        %p241 = pneg %p54
        %p242 = pneg %p51
        %s243 = sand.u32 %s21, 1
        %s244 = scalar_lea.sflag [#allocation7], %s243
        %s245 = sand.u32 %s69, 1
        %s246 = smul.addr %s245, 1152
        %s247 = scalar_lea.vmem [#allocation6], %s246
        %p248 = pneg %p82
        %p249 = pneg %p79
        %s250 = sand.u32 %s21, 1
        %s251 = scalar_lea.sflag [#allocation7], %s250
        %s252 = sand.u32 %s95, 1
        %s253 = smul.addr %s252, 3
        %s254 = scalar_lea.vmem [#allocation8], %s253
        %p255 = pneg %p108
        %p256 = pneg %p105
        %p257 = pneg %p134
        %p258 = pneg %p131
        %s259 = sand.u32 %s121, 1
        %s260 = scalar_lea.sflag [#allocation5], %s259
        %s261 = sand.u32 %s121, 1
        %s262 = smul.addr %s261, 120
        %s263 = scalar_lea.vmem [#allocation9], %s262
        %s264 = smul.u32 6, %s26
        %s265 = smul.u32 96, %s26
        %s266 = smul.u32 3, %s25
        %s267 = smul.u32 3, %s25
        %s268 = smul.u32 3, %s25
        %p270 = scmp.eq.s32.totalorder %s26, 0
        // Predicated region
        $region45: #{tpu_custom_call.1} parent=31 // pred_check
          %p271 = pneg %p270
        $region46: #{tpu_custom_call.1} parent=31 // pred_check_branch
          %273 = sbr.rel (%p271) target = $region48
        $region47: #{tpu_custom_call.1} parent=31 // pred_region
          %274 = vst [vmem:[#allocation2] sm:$0xff] 0.0
          %275 = vst [vmem:[#allocation2 + $0x8] sm:$0xff] 0.0
          %276 = vst [vmem:[#allocation2 + $0x10] sm:$0xff] 0.0
          %277 = vst [vmem:[#allocation2 + $0x18] sm:$0xff] 0.0
          %278 = vst [vmem:[#allocation2 + $0x20] sm:$0xff] 0.0
          %279 = vst [vmem:[#allocation2 + $0x28] sm:$0xff] 0.0
          %280 = vst [vmem:[#allocation2 + $0x30] sm:$0xff] 0.0
          %281 = vst [vmem:[#allocation2 + $0x38] sm:$0xff] 0.0
          %282 = vst [vmem:[#allocation2 + $0x40] sm:$0xff] 0.0
          %283 = vst [vmem:[#allocation2 + $0x48] sm:$0xff] 0.0
          %284 = vst [vmem:[#allocation2 + $0x50] sm:$0xff] 0.0
          %285 = vst [vmem:[#allocation2 + $0x58] sm:$0xff] 0.0
          %286 = vst [vmem:[#allocation2 + $0x60] sm:$0xff] 0.0
          %287 = vst [vmem:[#allocation2 + $0x68] sm:$0xff] 0.0
          %288 = vst [vmem:[#allocation2 + $0x70] sm:$0xff] 0.0
        $region48: #{tpu_custom_call.1} parent=31 // pred_fallthru
          _
        %v289 = vld [vmem:[#allocation2] sm:$0xff]
        %v290 = vld [vmem:[#allocation2 + $0x8] sm:$0xff]
        %v291 = vld [vmem:[#allocation2 + $0x10] sm:$0xff]
        %v292 = vld [vmem:[#allocation2 + $0x18] sm:$0xff]
        %v293 = vld [vmem:[#allocation2 + $0x20] sm:$0xff]
        %v294 = vld [vmem:[#allocation2 + $0x28] sm:$0xff]
        %v295 = vld [vmem:[#allocation2 + $0x30] sm:$0xff]
        %v296 = vld [vmem:[#allocation2 + $0x38] sm:$0xff]
        %v297 = vld [vmem:[#allocation2 + $0x40] sm:$0xff]
        %v298 = vld [vmem:[#allocation2 + $0x48] sm:$0xff]
        %v299 = vld [vmem:[#allocation2 + $0x50] sm:$0xff]
        %v300 = vld [vmem:[#allocation2 + $0x58] sm:$0xff]
        %v301 = vld [vmem:[#allocation2 + $0x60] sm:$0xff]
        %v302 = vld [vmem:[#allocation2 + $0x68] sm:$0xff]
        %v303 = vld [vmem:[#allocation2 + $0x70] sm:$0xff]
        %v304 = vld [vmem:[#allocation3] sm:$0xff]
        %v305 = vld [vmem:[#allocation3 + $0x8] sm:$0xff]
        %v306 = vld [vmem:[#allocation3 + $0x10] sm:$0xff]
        %v307 = vld [vmem:[#allocation3 + $0x18] sm:$0xff]
        %v308 = vld [vmem:[#allocation3 + $0x20] sm:$0xff]
        %v309 = vld [vmem:[#allocation3 + $0x28] sm:$0xff]
        %v310 = vld [vmem:[#allocation3 + $0x30] sm:$0xff]
        %v311 = vld [vmem:[#allocation3 + $0x38] sm:$0xff]
        %v312 = vld [vmem:[#allocation3 + $0x40] sm:$0xff]
        %v313 = vld [vmem:[#allocation3 + $0x48] sm:$0xff]
        %v314 = vld [vmem:[#allocation3 + $0x50] sm:$0xff]
        %v315 = vld [vmem:[#allocation3 + $0x58] sm:$0xff]
        %v316 = vld [vmem:[#allocation3 + $0x60] sm:$0xff]
        %v317 = vld [vmem:[#allocation3 + $0x68] sm:$0xff]
        %v318 = vld [vmem:[#allocation3 + $0x70] sm:$0xff]
        %v319 = vld [vmem:[%s227] sm:$0xff]
        %v320 = vld [vmem:[%s227 + $0x8] sm:$0xf]
        %v321 = vld [vmem:[%s227 + $0xc] sm:$0xff]
        %v322 = vld [vmem:[%s227 + $0x14] sm:$0xf]
        %v323 = vld [vmem:[%s227 + $0x18] sm:$0xff]
        %v324 = vld [vmem:[%s227 + $0x20] sm:$0xf]
        %v325 = vld [vmem:[%s227 + $0x24] sm:$0xff]
        %v326 = vld [vmem:[%s227 + $0x2c] sm:$0xf]
        %v327 = vld [vmem:[%s227 + $0x30] sm:$0xff]
        %v328 = vld [vmem:[%s227 + $0x38] sm:$0xf]
        %v329 = vld [vmem:[%s227 + $0x3c] sm:$0xff]
        %v330 = vld [vmem:[%s227 + $0x44] sm:$0xf]
        %v331 = vld [vmem:[%s227 + $0x48] sm:$0xff]
        %v332 = vld [vmem:[%s227 + $0x50] sm:$0xf]
        %v333 = vld [vmem:[%s227 + $0x54] sm:$0xff]
        %v334 = vld [vmem:[%s227 + $0x5c] sm:$0xf]
        %v335 = vld [vmem:[%s227 + $0x60] sm:$0xff]
        %v336 = vld [vmem:[%s227 + $0x68] sm:$0xf]
        %v337 = vld [vmem:[%s227 + $0x6c] sm:$0xff]
        %v338 = vld [vmem:[%s227 + $0x74] sm:$0xf]
        %v339 = vld [vmem:[%s227 + $0x78] sm:$0xff]
        %v340 = vld [vmem:[%s227 + $0x80] sm:$0xf]
        %v341 = vld [vmem:[%s227 + $0x84] sm:$0xff]
        %v342 = vld [vmem:[%s227 + $0x8c] sm:$0xf]
        %v343 = vld [vmem:[%s227 + $0x90] sm:$0xff]
        %v344 = vld [vmem:[%s227 + $0x98] sm:$0xf]
        %v345 = vld [vmem:[%s227 + $0x9c] sm:$0xff]
        %v346 = vld [vmem:[%s227 + $0xa4] sm:$0xf]
        %v347 = vld [vmem:[%s227 + $0xa8] sm:$0xff]
        %v348 = vld [vmem:[%s227 + $0xb0] sm:$0xf]
        %v349 = vld [vmem:[%s227 + $0xb4] sm:$0xff]
        %v350 = vld [vmem:[%s227 + $0xbc] sm:$0xf]
        %v351 = vld [vmem:[%s227 + $0xc0] sm:$0xff]
        %v352 = vld [vmem:[%s227 + $0xc8] sm:$0xf]
        %v353 = vld [vmem:[%s227 + $0xcc] sm:$0xff]
        %v354 = vld [vmem:[%s227 + $0xd4] sm:$0xf]
        %v355 = vld [vmem:[%s227 + $0xd8] sm:$0xff]
        %v356 = vld [vmem:[%s227 + $0xe0] sm:$0xf]
        %v357 = vld [vmem:[%s227 + $0xe4] sm:$0xff]
        %v358 = vld [vmem:[%s227 + $0xec] sm:$0xf]
        %v359 = vld [vmem:[%s227 + $0xf0] sm:$0xff]
        %v360 = vld [vmem:[%s227 + $0xf8] sm:$0xf]
        %v361 = vld [vmem:[%s227 + $0xfc] sm:$0xff]
        %v362 = vld [vmem:[%s227 + $0x104] sm:$0xf]
        %v363 = vld [vmem:[%s227 + $0x108] sm:$0xff]
        %v364 = vld [vmem:[%s227 + $0x110] sm:$0xf]
        %v365 = vld [vmem:[%s227 + $0x114] sm:$0xff]
        %v366 = vld [vmem:[%s227 + $0x11c] sm:$0xf]
        %v367 = vld [vmem:[%s227 + $0x120] sm:$0xff]
        %v368 = vld [vmem:[%s227 + $0x128] sm:$0xf]
        %v369 = vld [vmem:[%s227 + $0x12c] sm:$0xff]
        %v370 = vld [vmem:[%s227 + $0x134] sm:$0xf]
        %v371 = vld [vmem:[%s227 + $0x138] sm:$0xff]
        %v372 = vld [vmem:[%s227 + $0x140] sm:$0xf]
        %v373 = vld [vmem:[%s227 + $0x144] sm:$0xff]
        %v374 = vld [vmem:[%s227 + $0x14c] sm:$0xf]
        %v375 = vld [vmem:[%s227 + $0x150] sm:$0xff]
        %v376 = vld [vmem:[%s227 + $0x158] sm:$0xf]
        %v377 = vld [vmem:[%s227 + $0x15c] sm:$0xff]
        %v378 = vld [vmem:[%s227 + $0x164] sm:$0xf]
        %v379 = vld [vmem:[%s227 + $0x168] sm:$0xff]
        %v380 = vld [vmem:[%s227 + $0x170] sm:$0xf]
        %v381 = vld [vmem:[%s227 + $0x174] sm:$0xff]
        %v382 = vld [vmem:[%s227 + $0x17c] sm:$0xf]
        %v383 = vld [vmem:[%s227 + $0x180] sm:$0xff]
        %v384 = vld [vmem:[%s227 + $0x188] sm:$0xf]
        %v385 = vld [vmem:[%s227 + $0x18c] sm:$0xff]
        %v386 = vld [vmem:[%s227 + $0x194] sm:$0xf]
        %v387 = vld [vmem:[%s227 + $0x198] sm:$0xff]
        %v388 = vld [vmem:[%s227 + $0x1a0] sm:$0xf]
        %v389 = vld [vmem:[%s227 + $0x1a4] sm:$0xff]
        %v390 = vld [vmem:[%s227 + $0x1ac] sm:$0xf]
        %v391 = vld [vmem:[%s227 + $0x1b0] sm:$0xff]
        %v392 = vld [vmem:[%s227 + $0x1b8] sm:$0xf]
        %v393 = vld [vmem:[%s227 + $0x1bc] sm:$0xff]
        %v394 = vld [vmem:[%s227 + $0x1c4] sm:$0xf]
        %v395 = vld [vmem:[%s227 + $0x1c8] sm:$0xff]
        %v396 = vld [vmem:[%s227 + $0x1d0] sm:$0xf]
        %v397 = vld [vmem:[%s227 + $0x1d4] sm:$0xff]
        %v398 = vld [vmem:[%s227 + $0x1dc] sm:$0xf]
        %v399 = vld [vmem:[%s227 + $0x1e0] sm:$0xff]
        %v400 = vld [vmem:[%s227 + $0x1e8] sm:$0xf]
        %v401 = vld [vmem:[%s227 + $0x1ec] sm:$0xff]
        %v402 = vld [vmem:[%s227 + $0x1f4] sm:$0xf]
        %v403 = vld [vmem:[%s227 + $0x1f8] sm:$0xff]
        %v404 = vld [vmem:[%s227 + $0x200] sm:$0xf]
        %v405 = vld [vmem:[%s227 + $0x204] sm:$0xff]
        %v406 = vld [vmem:[%s227 + $0x20c] sm:$0xf]
        %v407 = vld [vmem:[%s227 + $0x210] sm:$0xff]
        %v408 = vld [vmem:[%s227 + $0x218] sm:$0xf]
        %v409 = vld [vmem:[%s227 + $0x21c] sm:$0xff]
        %v410 = vld [vmem:[%s227 + $0x224] sm:$0xf]
        %v411 = vld [vmem:[%s227 + $0x228] sm:$0xff]
        %v412 = vld [vmem:[%s227 + $0x230] sm:$0xf]
        %v413 = vld [vmem:[%s227 + $0x234] sm:$0xff]
        %v414 = vld [vmem:[%s227 + $0x23c] sm:$0xf]
        %v415 = vld [vmem:[%s227 + $0x240] sm:$0xff]
        %v416 = vld [vmem:[%s227 + $0x248] sm:$0xf]
        %v417 = vld [vmem:[%s227 + $0x24c] sm:$0xff]
        %v418 = vld [vmem:[%s227 + $0x254] sm:$0xf]
        %v419 = vld [vmem:[%s227 + $0x258] sm:$0xff]
        %v420 = vld [vmem:[%s227 + $0x260] sm:$0xf]
        %v421 = vld [vmem:[%s227 + $0x264] sm:$0xff]
        %v422 = vld [vmem:[%s227 + $0x26c] sm:$0xf]
        %v423 = vld [vmem:[%s227 + $0x270] sm:$0xff]
        %v424 = vld [vmem:[%s227 + $0x278] sm:$0xf]
        %v425 = vld [vmem:[%s227 + $0x27c] sm:$0xff]
        %v426 = vld [vmem:[%s227 + $0x284] sm:$0xf]
        %v427 = vld [vmem:[%s227 + $0x288] sm:$0xff]
        %v428 = vld [vmem:[%s227 + $0x290] sm:$0xf]
        %v429 = vld [vmem:[%s227 + $0x294] sm:$0xff]
        %v430 = vld [vmem:[%s227 + $0x29c] sm:$0xf]
        %v431 = vld [vmem:[%s227 + $0x2a0] sm:$0xff]
        %v432 = vld [vmem:[%s227 + $0x2a8] sm:$0xf]
        %v433 = vld [vmem:[%s227 + $0x2ac] sm:$0xff]
        %v434 = vld [vmem:[%s227 + $0x2b4] sm:$0xf]
        %v435 = vld [vmem:[%s227 + $0x2b8] sm:$0xff]
        %v436 = vld [vmem:[%s227 + $0x2c0] sm:$0xf]
        %v437 = vld [vmem:[%s227 + $0x2c4] sm:$0xff]
        %v438 = vld [vmem:[%s227 + $0x2cc] sm:$0xf]
        %v439 = vld [vmem:[%s227 + $0x2d0] sm:$0xff]
        %v440 = vld [vmem:[%s227 + $0x2d8] sm:$0xf]
        %v441 = vld [vmem:[%s227 + $0x2dc] sm:$0xff]
        %v442 = vld [vmem:[%s227 + $0x2e4] sm:$0xf]
        %v443 = vld [vmem:[%s227 + $0x2e8] sm:$0xff]
        %v444 = vld [vmem:[%s227 + $0x2f0] sm:$0xf]
        %v445 = vld [vmem:[%s227 + $0x2f4] sm:$0xff]
        %v446 = vld [vmem:[%s227 + $0x2fc] sm:$0xf]
        %v447 = vld [vmem:[%s227 + $0x300] sm:$0xff]
        %v448 = vld [vmem:[%s227 + $0x308] sm:$0xf]
        %v449 = vld [vmem:[%s227 + $0x30c] sm:$0xff]
        %v450 = vld [vmem:[%s227 + $0x314] sm:$0xf]
        %v451 = vld [vmem:[%s227 + $0x318] sm:$0xff]
        %v452 = vld [vmem:[%s227 + $0x320] sm:$0xf]
        %v453 = vld [vmem:[%s227 + $0x324] sm:$0xff]
        %v454 = vld [vmem:[%s227 + $0x32c] sm:$0xf]
        %v455 = vld [vmem:[%s227 + $0x330] sm:$0xff]
        %v456 = vld [vmem:[%s227 + $0x338] sm:$0xf]
        %v457 = vld [vmem:[%s227 + $0x33c] sm:$0xff]
        %v458 = vld [vmem:[%s227 + $0x344] sm:$0xf]
        %v459 = vld [vmem:[%s227 + $0x348] sm:$0xff]
        %v460 = vld [vmem:[%s227 + $0x350] sm:$0xf]
        %v461 = vld [vmem:[%s227 + $0x354] sm:$0xff]
        %v462 = vld [vmem:[%s227 + $0x35c] sm:$0xf]
        %v463 = vld [vmem:[%s227 + $0x360] sm:$0xff]
        %v464 = vld [vmem:[%s227 + $0x368] sm:$0xf]
        %v465 = vld [vmem:[%s227 + $0x36c] sm:$0xff]
        %v466 = vld [vmem:[%s227 + $0x374] sm:$0xf]
        %v467 = vld [vmem:[%s227 + $0x378] sm:$0xff]
        %v468 = vld [vmem:[%s227 + $0x380] sm:$0xf]
        %v469 = vld [vmem:[%s227 + $0x384] sm:$0xff]
        %v470 = vld [vmem:[%s227 + $0x38c] sm:$0xf]
        %v471 = vld [vmem:[%s227 + $0x390] sm:$0xff]
        %v472 = vld [vmem:[%s227 + $0x398] sm:$0xf]
        %v473 = vld [vmem:[%s227 + $0x39c] sm:$0xff]
        %v474 = vld [vmem:[%s227 + $0x3a4] sm:$0xf]
        %v475 = vld [vmem:[%s227 + $0x3a8] sm:$0xff]
        %v476 = vld [vmem:[%s227 + $0x3b0] sm:$0xf]
        %v477 = vld [vmem:[%s227 + $0x3b4] sm:$0xff]
        %v478 = vld [vmem:[%s227 + $0x3bc] sm:$0xf]
        %v479 = vld [vmem:[%s227 + $0x3c0] sm:$0xff]
        %v480 = vld [vmem:[%s227 + $0x3c8] sm:$0xf]
        %v481 = vld [vmem:[%s227 + $0x3cc] sm:$0xff]
        %v482 = vld [vmem:[%s227 + $0x3d4] sm:$0xf]
        %v483 = vld [vmem:[%s227 + $0x3d8] sm:$0xff]
        %v484 = vld [vmem:[%s227 + $0x3e0] sm:$0xf]
        %v485 = vld [vmem:[%s227 + $0x3e4] sm:$0xff]
        %v486 = vld [vmem:[%s227 + $0x3ec] sm:$0xf]
        %v487 = vld [vmem:[%s227 + $0x3f0] sm:$0xff]
        %v488 = vld [vmem:[%s227 + $0x3f8] sm:$0xf]
        %v489 = vld [vmem:[%s227 + $0x3fc] sm:$0xff]
        %v490 = vld [vmem:[%s227 + $0x404] sm:$0xf]
        %v491 = vld [vmem:[%s227 + $0x408] sm:$0xff]
        %v492 = vld [vmem:[%s227 + $0x410] sm:$0xf]
        %v493 = vld [vmem:[%s227 + $0x414] sm:$0xff]
        %v494 = vld [vmem:[%s227 + $0x41c] sm:$0xf]
        %v495 = vld [vmem:[%s227 + $0x420] sm:$0xff]
        %v496 = vld [vmem:[%s227 + $0x428] sm:$0xf]
        %v497 = vld [vmem:[%s227 + $0x42c] sm:$0xff]
        %v498 = vld [vmem:[%s227 + $0x434] sm:$0xf]
        %v499 = vld [vmem:[%s227 + $0x438] sm:$0xff]
        %v500 = vld [vmem:[%s227 + $0x440] sm:$0xf]
        %v501 = vld [vmem:[%s227 + $0x444] sm:$0xff]
        %v502 = vld [vmem:[%s227 + $0x44c] sm:$0xf]
        %v503 = vld [vmem:[%s227 + $0x450] sm:$0xff]
        %v504 = vld [vmem:[%s227 + $0x458] sm:$0xf]
        %v505 = vld [vmem:[%s227 + $0x45c] sm:$0xff]
        %v506 = vld [vmem:[%s227 + $0x464] sm:$0xf]
        %v507 = vld [vmem:[%s227 + $0x468] sm:$0xff]
        %v508 = vld [vmem:[%s227 + $0x470] sm:$0xf]
        %v509 = vld [vmem:[%s227 + $0x474] sm:$0xff]
        %v510 = vld [vmem:[%s227 + $0x47c] sm:$0xf]
        %v526 = vunpack.c.l.b16 %v304
        %v527 = vunpack.c.h.b16 %v304
        %v528 = vunpack.c.l.b16 %v305
        %v529 = vunpack.c.h.b16 %v305
        %v530 = vunpack.c.l.b16 %v306
        %v531 = vunpack.c.h.b16 %v306
        %v532 = vunpack.c.l.b16 %v307
        %v533 = vunpack.c.h.b16 %v307
        %v534 = vunpack.c.l.b16 %v308
        %v535 = vunpack.c.h.b16 %v308
        %v536 = vunpack.c.l.b16 %v309
        %v537 = vunpack.c.h.b16 %v309
        %v538 = vunpack.c.l.b16 %v310
        %v539 = vunpack.c.h.b16 %v310
        %v540 = vunpack.c.l.b16 %v311
        %v541 = vunpack.c.h.b16 %v311
        %v542 = vunpack.c.l.b16 %v312
        %v543 = vunpack.c.h.b16 %v312
        %v544 = vunpack.c.l.b16 %v313
        %v545 = vunpack.c.h.b16 %v313
        %v546 = vunpack.c.l.b16 %v314
        %v547 = vunpack.c.h.b16 %v314
        %v548 = vunpack.c.l.b16 %v315
        %v549 = vunpack.c.h.b16 %v315
        %v550 = vunpack.c.l.b16 %v316
        %v551 = vunpack.c.h.b16 %v316
        %v552 = vunpack.c.l.b16 %v317
        %v553 = vunpack.c.h.b16 %v317
        %v554 = vunpack.c.l.b16 %v318
        %v555 = vunpack.c.h.b16 %v318
        %v556 = vpack.c.b16 %v532, %v526
        %v557 = vpack.c.b16 %v533, %v527
        %v558 = vpack.c.b16 %v534, %v528
        %v559 = vpack.c.b16 %v535, %v529
        %v560 = vpack.c.b16 %v536, %v530
        %v561 = vpack.c.b16 %v537, %v531
        %v562 = vpack.c.b16 %v544, %v538
        %v563 = vpack.c.b16 %v545, %v539
        %v564 = vpack.c.b16 %v546, %v540
        %v565 = vpack.c.b16 %v547, %v541
        %v566 = vpack.c.b16 %v548, %v542
        %v567 = vpack.c.b16 %v549, %v543
        %v568 = vpack.c.b16 %v550, %v550
        %v569 = vpack.c.b16 %v551, %v551
        %v570 = vpack.c.b16 %v552, %v552
        %v571 = vpack.c.b16 %v553, %v553
        %v572 = vpack.c.b16 %v554, %v554
        %v573 = vpack.c.b16 %v555, %v555
        %v784 = vunpack.c.l.b16 %v319
        %v785 = vunpack.c.h.b16 %v319
        %v786 = vunpack.c.l.b16 %v320
        %v787 = vunpack.c.l.b16 %v321
        %v788 = vunpack.c.h.b16 %v321
        %v789 = vunpack.c.l.b16 %v322
        %v790 = vunpack.c.l.b16 %v323
        %v791 = vunpack.c.h.b16 %v323
        %v792 = vunpack.c.l.b16 %v324
        %v793 = vunpack.c.l.b16 %v325
        %v794 = vunpack.c.h.b16 %v325
        %v795 = vunpack.c.l.b16 %v326
        %v796 = vunpack.c.l.b16 %v327
        %v797 = vunpack.c.h.b16 %v327
        %v798 = vunpack.c.l.b16 %v328
        %v799 = vunpack.c.l.b16 %v329
        %v800 = vunpack.c.h.b16 %v329
        %v801 = vunpack.c.l.b16 %v330
        %v802 = vunpack.c.l.b16 %v331
        %v803 = vunpack.c.h.b16 %v331
        %v804 = vunpack.c.l.b16 %v332
        %v805 = vunpack.c.l.b16 %v333
        %v806 = vunpack.c.h.b16 %v333
        %v807 = vunpack.c.l.b16 %v334
        %v808 = vunpack.c.l.b16 %v335
        %v809 = vunpack.c.h.b16 %v335
        %v810 = vunpack.c.l.b16 %v336
        %v811 = vunpack.c.l.b16 %v337
        %v812 = vunpack.c.h.b16 %v337
        %v813 = vunpack.c.l.b16 %v338
        %v814 = vunpack.c.l.b16 %v339
        %v815 = vunpack.c.h.b16 %v339
        %v816 = vunpack.c.l.b16 %v340
        %v817 = vunpack.c.l.b16 %v341
        %v818 = vunpack.c.h.b16 %v341
        %v819 = vunpack.c.l.b16 %v342
        %v820 = vunpack.c.l.b16 %v343
        %v821 = vunpack.c.h.b16 %v343
        %v822 = vunpack.c.l.b16 %v344
        %v823 = vunpack.c.l.b16 %v345
        %v824 = vunpack.c.h.b16 %v345
        %v825 = vunpack.c.l.b16 %v346
        %v826 = vunpack.c.l.b16 %v347
        %v827 = vunpack.c.h.b16 %v347
        %v828 = vunpack.c.l.b16 %v348
        %v829 = vunpack.c.l.b16 %v349
        %v830 = vunpack.c.h.b16 %v349
        %v831 = vunpack.c.l.b16 %v350
        %v832 = vunpack.c.l.b16 %v351
        %v833 = vunpack.c.h.b16 %v351
        %v834 = vunpack.c.l.b16 %v352
        %v835 = vunpack.c.l.b16 %v353
        %v836 = vunpack.c.h.b16 %v353
        %v837 = vunpack.c.l.b16 %v354
        %v838 = vunpack.c.l.b16 %v355
        %v839 = vunpack.c.h.b16 %v355
        %v840 = vunpack.c.l.b16 %v356
        %v841 = vunpack.c.l.b16 %v357
        %v842 = vunpack.c.h.b16 %v357
        %v843 = vunpack.c.l.b16 %v358
        %v844 = vunpack.c.l.b16 %v359
        %v845 = vunpack.c.h.b16 %v359
        %v846 = vunpack.c.l.b16 %v360
        %v847 = vunpack.c.l.b16 %v361
        %v848 = vunpack.c.h.b16 %v361
        %v849 = vunpack.c.l.b16 %v362
        %v850 = vunpack.c.l.b16 %v363
        %v851 = vunpack.c.h.b16 %v363
        %v852 = vunpack.c.l.b16 %v364
        %v853 = vunpack.c.l.b16 %v365
        %v854 = vunpack.c.h.b16 %v365
        %v855 = vunpack.c.l.b16 %v366
        %v856 = vunpack.c.l.b16 %v367
        %v857 = vunpack.c.h.b16 %v367
        %v858 = vunpack.c.l.b16 %v368
        %v859 = vunpack.c.l.b16 %v369
        %v860 = vunpack.c.h.b16 %v369
        %v861 = vunpack.c.l.b16 %v370
        %v862 = vunpack.c.l.b16 %v371
        %v863 = vunpack.c.h.b16 %v371
        %v864 = vunpack.c.l.b16 %v372
        %v865 = vunpack.c.l.b16 %v373
        %v866 = vunpack.c.h.b16 %v373
        %v867 = vunpack.c.l.b16 %v374
        %v868 = vunpack.c.l.b16 %v375
        %v869 = vunpack.c.h.b16 %v375
        %v870 = vunpack.c.l.b16 %v376
        %v871 = vunpack.c.l.b16 %v377
        %v872 = vunpack.c.h.b16 %v377
        %v873 = vunpack.c.l.b16 %v378
        %v874 = vunpack.c.l.b16 %v379
        %v875 = vunpack.c.h.b16 %v379
        %v876 = vunpack.c.l.b16 %v380
        %v877 = vunpack.c.l.b16 %v381
        %v878 = vunpack.c.h.b16 %v381
        %v879 = vunpack.c.l.b16 %v382
        %v880 = vunpack.c.l.b16 %v383
        %v881 = vunpack.c.h.b16 %v383
        %v882 = vunpack.c.l.b16 %v384
        %v883 = vunpack.c.l.b16 %v385
        %v884 = vunpack.c.h.b16 %v385
        %v885 = vunpack.c.l.b16 %v386
        %v886 = vunpack.c.l.b16 %v387
        %v887 = vunpack.c.h.b16 %v387
        %v888 = vunpack.c.l.b16 %v388
        %v889 = vunpack.c.l.b16 %v389
        %v890 = vunpack.c.h.b16 %v389
        %v891 = vunpack.c.l.b16 %v390
        %v892 = vunpack.c.l.b16 %v391
        %v893 = vunpack.c.h.b16 %v391
        %v894 = vunpack.c.l.b16 %v392
        %v895 = vunpack.c.l.b16 %v393
        %v896 = vunpack.c.h.b16 %v393
        %v897 = vunpack.c.l.b16 %v394
        %v898 = vunpack.c.l.b16 %v395
        %v899 = vunpack.c.h.b16 %v395
        %v900 = vunpack.c.l.b16 %v396
        %v901 = vunpack.c.l.b16 %v397
        %v902 = vunpack.c.h.b16 %v397
        %v903 = vunpack.c.l.b16 %v398
        %v904 = vunpack.c.l.b16 %v399
        %v905 = vunpack.c.h.b16 %v399
        %v906 = vunpack.c.l.b16 %v400
        %v907 = vunpack.c.l.b16 %v401
        %v908 = vunpack.c.h.b16 %v401
        %v909 = vunpack.c.l.b16 %v402
        %v910 = vunpack.c.l.b16 %v403
        %v911 = vunpack.c.h.b16 %v403
        %v912 = vunpack.c.l.b16 %v404
        %v913 = vunpack.c.l.b16 %v405
        %v914 = vunpack.c.h.b16 %v405
        %v915 = vunpack.c.l.b16 %v406
        %v916 = vunpack.c.l.b16 %v407
        %v917 = vunpack.c.h.b16 %v407
        %v918 = vunpack.c.l.b16 %v408
        %v919 = vunpack.c.l.b16 %v409
        %v920 = vunpack.c.h.b16 %v409
        %v921 = vunpack.c.l.b16 %v410
        %v922 = vunpack.c.l.b16 %v411
        %v923 = vunpack.c.h.b16 %v411
        %v924 = vunpack.c.l.b16 %v412
        %v925 = vunpack.c.l.b16 %v413
        %v926 = vunpack.c.h.b16 %v413
        %v927 = vunpack.c.l.b16 %v414
        %v928 = vunpack.c.l.b16 %v415
        %v929 = vunpack.c.h.b16 %v415
        %v930 = vunpack.c.l.b16 %v416
        %v931 = vunpack.c.l.b16 %v417
        %v932 = vunpack.c.h.b16 %v417
        %v933 = vunpack.c.l.b16 %v418
        %v934 = vunpack.c.l.b16 %v419
        %v935 = vunpack.c.h.b16 %v419
        %v936 = vunpack.c.l.b16 %v420
        %v937 = vunpack.c.l.b16 %v421
        %v938 = vunpack.c.h.b16 %v421
        %v939 = vunpack.c.l.b16 %v422
        %v940 = vunpack.c.l.b16 %v423
        %v941 = vunpack.c.h.b16 %v423
        %v942 = vunpack.c.l.b16 %v424
        %v943 = vunpack.c.l.b16 %v425
        %v944 = vunpack.c.h.b16 %v425
        %v945 = vunpack.c.l.b16 %v426
        %v946 = vunpack.c.l.b16 %v427
        %v947 = vunpack.c.h.b16 %v427
        %v948 = vunpack.c.l.b16 %v428
        %v949 = vunpack.c.l.b16 %v429
        %v950 = vunpack.c.h.b16 %v429
        %v951 = vunpack.c.l.b16 %v430
        %v952 = vunpack.c.l.b16 %v431
        %v953 = vunpack.c.h.b16 %v431
        %v954 = vunpack.c.l.b16 %v432
        %v955 = vunpack.c.l.b16 %v433
        %v956 = vunpack.c.h.b16 %v433
        %v957 = vunpack.c.l.b16 %v434
        %v958 = vunpack.c.l.b16 %v435
        %v959 = vunpack.c.h.b16 %v435
        %v960 = vunpack.c.l.b16 %v436
        %v961 = vunpack.c.l.b16 %v437
        %v962 = vunpack.c.h.b16 %v437
        %v963 = vunpack.c.l.b16 %v438
        %v964 = vunpack.c.l.b16 %v439
        %v965 = vunpack.c.h.b16 %v439
        %v966 = vunpack.c.l.b16 %v440
        %v967 = vunpack.c.l.b16 %v441
        %v968 = vunpack.c.h.b16 %v441
        %v969 = vunpack.c.l.b16 %v442
        %v970 = vunpack.c.l.b16 %v443
        %v971 = vunpack.c.h.b16 %v443
        %v972 = vunpack.c.l.b16 %v444
        %v973 = vunpack.c.l.b16 %v445
        %v974 = vunpack.c.h.b16 %v445
        %v975 = vunpack.c.l.b16 %v446
        %v976 = vunpack.c.l.b16 %v447
        %v977 = vunpack.c.h.b16 %v447
        %v978 = vunpack.c.l.b16 %v448
        %v979 = vunpack.c.l.b16 %v449
        %v980 = vunpack.c.h.b16 %v449
        %v981 = vunpack.c.l.b16 %v450
        %v982 = vunpack.c.l.b16 %v451
        %v983 = vunpack.c.h.b16 %v451
        %v984 = vunpack.c.l.b16 %v452
        %v985 = vunpack.c.l.b16 %v453
        %v986 = vunpack.c.h.b16 %v453
        %v987 = vunpack.c.l.b16 %v454
        %v988 = vunpack.c.l.b16 %v455
        %v989 = vunpack.c.h.b16 %v455
        %v990 = vunpack.c.l.b16 %v456
        %v991 = vunpack.c.l.b16 %v457
        %v992 = vunpack.c.h.b16 %v457
        %v993 = vunpack.c.l.b16 %v458
        %v994 = vunpack.c.l.b16 %v459
        %v995 = vunpack.c.h.b16 %v459
        %v996 = vunpack.c.l.b16 %v460
        %v997 = vunpack.c.l.b16 %v461
        %v998 = vunpack.c.h.b16 %v461
        %v999 = vunpack.c.l.b16 %v462
        %v1000 = vunpack.c.l.b16 %v463
        %v1001 = vunpack.c.h.b16 %v463
        %v1002 = vunpack.c.l.b16 %v464
        %v1003 = vunpack.c.l.b16 %v465
        %v1004 = vunpack.c.h.b16 %v465
        %v1005 = vunpack.c.l.b16 %v466
        %v1006 = vunpack.c.l.b16 %v467
        %v1007 = vunpack.c.h.b16 %v467
        %v1008 = vunpack.c.l.b16 %v468
        %v1009 = vunpack.c.l.b16 %v469
        %v1010 = vunpack.c.h.b16 %v469
        %v1011 = vunpack.c.l.b16 %v470
        %v1012 = vunpack.c.l.b16 %v471
        %v1013 = vunpack.c.h.b16 %v471
        %v1014 = vunpack.c.l.b16 %v472
        %v1015 = vunpack.c.l.b16 %v473
        %v1016 = vunpack.c.h.b16 %v473
        %v1017 = vunpack.c.l.b16 %v474
        %v1018 = vunpack.c.l.b16 %v475
        %v1019 = vunpack.c.h.b16 %v475
        %v1020 = vunpack.c.l.b16 %v476
        %v1021 = vunpack.c.l.b16 %v477
        %v1022 = vunpack.c.h.b16 %v477
        %v1023 = vunpack.c.l.b16 %v478
        %v1024 = vunpack.c.l.b16 %v479
        %v1025 = vunpack.c.h.b16 %v479
        %v1026 = vunpack.c.l.b16 %v480
        %v1027 = vunpack.c.l.b16 %v481
        %v1028 = vunpack.c.h.b16 %v481
        %v1029 = vunpack.c.l.b16 %v482
        %v1030 = vunpack.c.l.b16 %v483
        %v1031 = vunpack.c.h.b16 %v483
        %v1032 = vunpack.c.l.b16 %v484
        %v1033 = vunpack.c.l.b16 %v485
        %v1034 = vunpack.c.h.b16 %v485
        %v1035 = vunpack.c.l.b16 %v486
        %v1036 = vunpack.c.l.b16 %v487
        %v1037 = vunpack.c.h.b16 %v487
        %v1038 = vunpack.c.l.b16 %v488
        %v1039 = vunpack.c.l.b16 %v489
        %v1040 = vunpack.c.h.b16 %v489
        %v1041 = vunpack.c.l.b16 %v490
        %v1042 = vunpack.c.l.b16 %v491
        %v1043 = vunpack.c.h.b16 %v491
        %v1044 = vunpack.c.l.b16 %v492
        %v1045 = vunpack.c.l.b16 %v493
        %v1046 = vunpack.c.h.b16 %v493
        %v1047 = vunpack.c.l.b16 %v494
        %v1048 = vunpack.c.l.b16 %v495
        %v1049 = vunpack.c.h.b16 %v495
        %v1050 = vunpack.c.l.b16 %v496
        %v1051 = vunpack.c.l.b16 %v497
        %v1052 = vunpack.c.h.b16 %v497
        %v1053 = vunpack.c.l.b16 %v498
        %v1054 = vunpack.c.l.b16 %v499
        %v1055 = vunpack.c.h.b16 %v499
        %v1056 = vunpack.c.l.b16 %v500
        %v1057 = vunpack.c.l.b16 %v501
        %v1058 = vunpack.c.h.b16 %v501
        %v1059 = vunpack.c.l.b16 %v502
        %v1060 = vunpack.c.l.b16 %v503
        %v1061 = vunpack.c.h.b16 %v503
        %v1062 = vunpack.c.l.b16 %v504
        %v1063 = vunpack.c.l.b16 %v505
        %v1064 = vunpack.c.h.b16 %v505
        %v1065 = vunpack.c.l.b16 %v506
        %v1066 = vunpack.c.l.b16 %v507
        %v1067 = vunpack.c.h.b16 %v507
        %v1068 = vunpack.c.l.b16 %v508
        %v1069 = vunpack.c.l.b16 %v509
        %v1070 = vunpack.c.h.b16 %v509
        %v1071 = vunpack.c.l.b16 %v510
        %v1072 = vpack.c.b16 %v787, %v784
        %v1073 = vpack.c.b16 %v788, %v785
        %v1074 = vpack.c.b16 %v789, %v786
        %v1075 = vpack.c.b16 %v793, %v790
        %v1076 = vpack.c.b16 %v794, %v791
        %v1077 = vpack.c.b16 %v795, %v792
        %v1078 = vpack.c.b16 %v799, %v796
        %v1079 = vpack.c.b16 %v800, %v797
        %v1080 = vpack.c.b16 %v801, %v798
        %v1081 = vpack.c.b16 %v805, %v802
        %v1082 = vpack.c.b16 %v806, %v803
        %v1083 = vpack.c.b16 %v807, %v804
        %v1084 = vpack.c.b16 %v811, %v808
        %v1085 = vpack.c.b16 %v812, %v809
        %v1086 = vpack.c.b16 %v813, %v810
        %v1087 = vpack.c.b16 %v817, %v814
        %v1088 = vpack.c.b16 %v818, %v815
        %v1089 = vpack.c.b16 %v819, %v816
        %v1090 = vpack.c.b16 %v823, %v820
        %v1091 = vpack.c.b16 %v824, %v821
        %v1092 = vpack.c.b16 %v825, %v822
        %v1093 = vpack.c.b16 %v829, %v826
        %v1094 = vpack.c.b16 %v830, %v827
        %v1095 = vpack.c.b16 %v831, %v828
        %v1096 = vpack.c.b16 %v835, %v832
        %v1097 = vpack.c.b16 %v836, %v833
        %v1098 = vpack.c.b16 %v837, %v834
        %v1099 = vpack.c.b16 %v841, %v838
        %v1100 = vpack.c.b16 %v842, %v839
        %v1101 = vpack.c.b16 %v843, %v840
        %v1102 = vpack.c.b16 %v847, %v844
        %v1103 = vpack.c.b16 %v848, %v845
        %v1104 = vpack.c.b16 %v849, %v846
        %v1105 = vpack.c.b16 %v853, %v850
        %v1106 = vpack.c.b16 %v854, %v851
        %v1107 = vpack.c.b16 %v855, %v852
        %v1108 = vpack.c.b16 %v859, %v856
        %v1109 = vpack.c.b16 %v860, %v857
        %v1110 = vpack.c.b16 %v861, %v858
        %v1111 = vpack.c.b16 %v865, %v862
        %v1112 = vpack.c.b16 %v866, %v863
        %v1113 = vpack.c.b16 %v867, %v864
        %v1114 = vpack.c.b16 %v871, %v868
        %v1115 = vpack.c.b16 %v872, %v869
        %v1116 = vpack.c.b16 %v873, %v870
        %v1117 = vpack.c.b16 %v877, %v874
        %v1118 = vpack.c.b16 %v878, %v875
        %v1119 = vpack.c.b16 %v879, %v876
        %v1120 = vpack.c.b16 %v883, %v880
        %v1121 = vpack.c.b16 %v884, %v881
        %v1122 = vpack.c.b16 %v885, %v882
        %v1123 = vpack.c.b16 %v889, %v886
        %v1124 = vpack.c.b16 %v890, %v887
        %v1125 = vpack.c.b16 %v891, %v888
        %v1126 = vpack.c.b16 %v895, %v892
        %v1127 = vpack.c.b16 %v896, %v893
        %v1128 = vpack.c.b16 %v897, %v894
        %v1129 = vpack.c.b16 %v901, %v898
        %v1130 = vpack.c.b16 %v902, %v899
        %v1131 = vpack.c.b16 %v903, %v900
        %v1132 = vpack.c.b16 %v907, %v904
        %v1133 = vpack.c.b16 %v908, %v905
        %v1134 = vpack.c.b16 %v909, %v906
        %v1135 = vpack.c.b16 %v913, %v910
        %v1136 = vpack.c.b16 %v914, %v911
        %v1137 = vpack.c.b16 %v915, %v912
        %v1138 = vpack.c.b16 %v919, %v916
        %v1139 = vpack.c.b16 %v920, %v917
        %v1140 = vpack.c.b16 %v921, %v918
        %v1141 = vpack.c.b16 %v925, %v922
        %v1142 = vpack.c.b16 %v926, %v923
        %v1143 = vpack.c.b16 %v927, %v924
        %v1144 = vpack.c.b16 %v931, %v928
        %v1145 = vpack.c.b16 %v932, %v929
        %v1146 = vpack.c.b16 %v933, %v930
        %v1147 = vpack.c.b16 %v937, %v934
        %v1148 = vpack.c.b16 %v938, %v935
        %v1149 = vpack.c.b16 %v939, %v936
        %v1150 = vpack.c.b16 %v943, %v940
        %v1151 = vpack.c.b16 %v944, %v941
        %v1152 = vpack.c.b16 %v945, %v942
        %v1153 = vpack.c.b16 %v949, %v946
        %v1154 = vpack.c.b16 %v950, %v947
        %v1155 = vpack.c.b16 %v951, %v948
        %v1156 = vpack.c.b16 %v955, %v952
        %v1157 = vpack.c.b16 %v956, %v953
        %v1158 = vpack.c.b16 %v957, %v954
        %v1159 = vpack.c.b16 %v961, %v958
        %v1160 = vpack.c.b16 %v962, %v959
        %v1161 = vpack.c.b16 %v963, %v960
        %v1162 = vpack.c.b16 %v967, %v964
        %v1163 = vpack.c.b16 %v968, %v965
        %v1164 = vpack.c.b16 %v969, %v966
        %v1165 = vpack.c.b16 %v973, %v970
        %v1166 = vpack.c.b16 %v974, %v971
        %v1167 = vpack.c.b16 %v975, %v972
        %v1168 = vpack.c.b16 %v979, %v976
        %v1169 = vpack.c.b16 %v980, %v977
        %v1170 = vpack.c.b16 %v981, %v978
        %v1171 = vpack.c.b16 %v985, %v982
        %v1172 = vpack.c.b16 %v986, %v983
        %v1173 = vpack.c.b16 %v987, %v984
        %v1174 = vpack.c.b16 %v991, %v988
        %v1175 = vpack.c.b16 %v992, %v989
        %v1176 = vpack.c.b16 %v993, %v990
        %v1177 = vpack.c.b16 %v997, %v994
        %v1178 = vpack.c.b16 %v998, %v995
        %v1179 = vpack.c.b16 %v999, %v996
        %v1180 = vpack.c.b16 %v1003, %v1000
        %v1181 = vpack.c.b16 %v1004, %v1001
        %v1182 = vpack.c.b16 %v1005, %v1002
        %v1183 = vpack.c.b16 %v1009, %v1006
        %v1184 = vpack.c.b16 %v1010, %v1007
        %v1185 = vpack.c.b16 %v1011, %v1008
        %v1186 = vpack.c.b16 %v1015, %v1012
        %v1187 = vpack.c.b16 %v1016, %v1013
        %v1188 = vpack.c.b16 %v1017, %v1014
        %v1189 = vpack.c.b16 %v1021, %v1018
        %v1190 = vpack.c.b16 %v1022, %v1019
        %v1191 = vpack.c.b16 %v1023, %v1020
        %v1192 = vpack.c.b16 %v1027, %v1024
        %v1193 = vpack.c.b16 %v1028, %v1025
        %v1194 = vpack.c.b16 %v1029, %v1026
        %v1195 = vpack.c.b16 %v1033, %v1030
        %v1196 = vpack.c.b16 %v1034, %v1031
        %v1197 = vpack.c.b16 %v1035, %v1032
        %v1198 = vpack.c.b16 %v1039, %v1036
        %v1199 = vpack.c.b16 %v1040, %v1037
        %v1200 = vpack.c.b16 %v1041, %v1038
        %v1201 = vpack.c.b16 %v1045, %v1042
        %v1202 = vpack.c.b16 %v1046, %v1043
        %v1203 = vpack.c.b16 %v1047, %v1044
        %v1204 = vpack.c.b16 %v1051, %v1048
        %v1205 = vpack.c.b16 %v1052, %v1049
        %v1206 = vpack.c.b16 %v1053, %v1050
        %v1207 = vpack.c.b16 %v1057, %v1054
        %v1208 = vpack.c.b16 %v1058, %v1055
        %v1209 = vpack.c.b16 %v1059, %v1056
        %v1210 = vpack.c.b16 %v1063, %v1060
        %v1211 = vpack.c.b16 %v1064, %v1061
        %v1212 = vpack.c.b16 %v1065, %v1062
        %v1213 = vpack.c.b16 %v1069, %v1066
        %v1214 = vpack.c.b16 %v1070, %v1067
        %v1215 = vpack.c.b16 %v1071, %v1068
        %1360 = vmatprep.subr.bf16.mxu0 %v1073
        %1361 = vmatpush1.bf16.msra.mxu0 %v1072
        %1362 = vmatprep.subr.bf16.mxu0 %v1076
        %1363 = vmatpush1.bf16.msra.mxu0 %v1075
        %1364 = vmatprep.subr.bf16.mxu0 %v1079
        %1365 = vmatpush1.bf16.msra.mxu0 %v1078
        %1366 = vmatprep.subr.bf16.mxu0 %v1082
        %1367 = vmatpush1.bf16.msra.mxu0 %v1081
        %1368 = vmatprep.subr.bf16.mxu0 %v1085
        %1369 = vmatpush1.bf16.msra.mxu0 %v1084
        %1370 = vmatprep.subr.bf16.mxu0 %v1088
        %1371 = vmatpush1.bf16.msra.mxu0 %v1087
        %1372 = vmatprep.subr.bf16.mxu0 %v1091
        %1373 = vmatpush1.bf16.msra.mxu0 %v1090
        %1374 = vmatprep.subr.bf16.mxu0 %v1094
        %1375 = vmatpush1.bf16.msra.mxu0 %v1093
        %1376 = vmatprep.subr.bf16.mxu0 %v1097
        %1377 = vmatpush1.bf16.msra.mxu0 %v1096
        %1378 = vmatprep.subr.bf16.mxu0 %v1100
        %1379 = vmatpush1.bf16.msra.mxu0 %v1099
        %1380 = vmatprep.subr.bf16.mxu0 %v1103
        %1381 = vmatpush1.bf16.msra.mxu0 %v1102
        %1382 = vmatprep.subr.bf16.mxu0 %v1106
        %1383 = vmatpush1.bf16.msra.mxu0 %v1105
        %1384 = vmatprep.subr.bf16.mxu0 %v1109
        %1385 = vmatpush1.bf16.msra.mxu0 %v1108
        %1386 = vmatprep.subr.bf16.mxu0 %v1112
        %1387 = vmatpush1.bf16.msra.mxu0 %v1111
        %1388 = vmatprep.subr.bf16.mxu0 %v1115
        %1389 = vmatpush1.bf16.msra.mxu0 %v1114
        %1390 = vmatprep.subr.bf16.mxu0 %v1118
        %1391 = vmatpush1.bf16.msra.mxu0 %v1117
        %1392 = vmatprep.mubr.bf16.mxu0 %v557
        %1393 = vmatmul.mubr.bf16.gmra.mrb[0].mxu0 %v556
        %v1394 = vpop.f32.mrb[0].mxu0
        %v1395 = vadd.f32 0.0, %v1394
        %v1396 = vpop.f32.mrb[0].mxu0
        %v1397 = vadd.f32 0.0, %v1396
        %v1398 = vpop.f32.mrb[0].mxu0
        %v1399 = vadd.f32 0.0, %v1398
        %v1400 = vpop.f32.mrb[0].mxu0
        %v1401 = vadd.f32 0.0, %v1400
        %1402 = vmatprep.mubr.bf16.mxu0 %v563
        %1403 = vmatmul.mubr.bf16.gmra.mrb[0].mxu0 %v562
        %v1404 = vpop.f32.mrb[0].mxu0
        %v1405 = vadd.f32 0.0, %v1404
        %v1406 = vpop.f32.mrb[0].mxu0
        %v1407 = vadd.f32 0.0, %v1406
        %v1408 = vpop.f32.mrb[0].mxu0
        %v1409 = vadd.f32 0.0, %v1408
        %v1410 = vpop.f32.mrb[0].mxu0
        %v1411 = vadd.f32 0.0, %v1410
        %1412 = vmatprep.mubr.bf16.mxu0 %v569
        %1413 = vmatmul.mubr.bf16.gmra.mrb[0].mxu0 %v568
        %v1414 = vpop.f32.mrb[0].mxu0
        %v1415 = vadd.f32 0.0, %v1414
        %v1416 = vpop.f32.mrb[0].mxu0
        %v1417 = vadd.f32 0.0, %v1416
        %v1418 = vpop.f32.mrb[0].mxu0
        %v1419 = vpop.f32.mrb[0].mxu0
        %1420 = vdwg.mxu0
        %1421 = vmatprep.subr.bf16.mxu0 %v1121
        %1422 = vmatpush1.bf16.msra.mxu0 %v1120
        %1423 = vmatprep.subr.bf16.mxu0 %v1124
        %1424 = vmatpush1.bf16.msra.mxu0 %v1123
        %1425 = vmatprep.subr.bf16.mxu0 %v1127
        %1426 = vmatpush1.bf16.msra.mxu0 %v1126
        %1427 = vmatprep.subr.bf16.mxu0 %v1130
        %1428 = vmatpush1.bf16.msra.mxu0 %v1129
        %1429 = vmatprep.subr.bf16.mxu0 %v1133
        %1430 = vmatpush1.bf16.msra.mxu0 %v1132
        %1431 = vmatprep.subr.bf16.mxu0 %v1136
        %1432 = vmatpush1.bf16.msra.mxu0 %v1135
        %1433 = vmatprep.subr.bf16.mxu0 %v1139
        %1434 = vmatpush1.bf16.msra.mxu0 %v1138
        %1435 = vmatprep.subr.bf16.mxu0 %v1142
        %1436 = vmatpush1.bf16.msra.mxu0 %v1141
        %1437 = vmatprep.subr.bf16.mxu0 %v1145
        %1438 = vmatpush1.bf16.msra.mxu0 %v1144
        %1439 = vmatprep.subr.bf16.mxu0 %v1148
        %1440 = vmatpush1.bf16.msra.mxu0 %v1147
        %1441 = vmatprep.subr.bf16.mxu0 %v1151
        %1442 = vmatpush1.bf16.msra.mxu0 %v1150
        %1443 = vmatprep.subr.bf16.mxu0 %v1154
        %1444 = vmatpush1.bf16.msra.mxu0 %v1153
        %1445 = vmatprep.subr.bf16.mxu0 %v1157
        %1446 = vmatpush1.bf16.msra.mxu0 %v1156
        %1447 = vmatprep.subr.bf16.mxu0 %v1160
        %1448 = vmatpush1.bf16.msra.mxu0 %v1159
        %1449 = vmatprep.subr.bf16.mxu0 %v1163
        %1450 = vmatpush1.bf16.msra.mxu0 %v1162
        %1451 = vmatprep.subr.bf16.mxu0 %v1166
        %1452 = vmatpush1.bf16.msra.mxu0 %v1165
        %1453 = vmatprep.mubr.bf16.mxu0 %v559
        %1454 = vmatmul.mubr.bf16.gmra.mrb[0].mxu0 %v558
        %v1455 = vpop.f32.mrb[0].mxu0
        %v1456 = vadd.f32 %v1395, %v1455
        %v1457 = vpop.f32.mrb[0].mxu0
        %v1458 = vadd.f32 %v1397, %v1457
        %v1459 = vpop.f32.mrb[0].mxu0
        %v1460 = vadd.f32 %v1399, %v1459
        %v1461 = vpop.f32.mrb[0].mxu0
        %v1462 = vadd.f32 %v1401, %v1461
        %1463 = vmatprep.mubr.bf16.mxu0 %v565
        %1464 = vmatmul.mubr.bf16.gmra.mrb[0].mxu0 %v564
        %v1465 = vpop.f32.mrb[0].mxu0
        %v1466 = vadd.f32 %v1405, %v1465
        %v1467 = vpop.f32.mrb[0].mxu0
        %v1468 = vadd.f32 %v1407, %v1467
        %v1469 = vpop.f32.mrb[0].mxu0
        %v1470 = vadd.f32 %v1409, %v1469
        %v1471 = vpop.f32.mrb[0].mxu0
        %v1472 = vadd.f32 %v1411, %v1471
        %1473 = vmatprep.mubr.bf16.mxu0 %v571
        %1474 = vmatmul.mubr.bf16.gmra.mrb[0].mxu0 %v570
        %v1475 = vpop.f32.mrb[0].mxu0
        %v1476 = vadd.f32 %v1415, %v1475
        %v1477 = vpop.f32.mrb[0].mxu0
        %v1478 = vadd.f32 %v1417, %v1477
        %v1479 = vpop.f32.mrb[0].mxu0
        %v1480 = vpop.f32.mrb[0].mxu0
        %1481 = vdwg.mxu0
        %1482 = vmatprep.subr.bf16.mxu0 %v1169
        %1483 = vmatpush1.bf16.msra.mxu0 %v1168
        %1484 = vmatprep.subr.bf16.mxu0 %v1172
        %1485 = vmatpush1.bf16.msra.mxu0 %v1171
        %1486 = vmatprep.subr.bf16.mxu0 %v1175
        %1487 = vmatpush1.bf16.msra.mxu0 %v1174
        %1488 = vmatprep.subr.bf16.mxu0 %v1178
        %1489 = vmatpush1.bf16.msra.mxu0 %v1177
        %1490 = vmatprep.subr.bf16.mxu0 %v1181
        %1491 = vmatpush1.bf16.msra.mxu0 %v1180
        %1492 = vmatprep.subr.bf16.mxu0 %v1184
        %1493 = vmatpush1.bf16.msra.mxu0 %v1183
        %1494 = vmatprep.subr.bf16.mxu0 %v1187
        %1495 = vmatpush1.bf16.msra.mxu0 %v1186
        %1496 = vmatprep.subr.bf16.mxu0 %v1190
        %1497 = vmatpush1.bf16.msra.mxu0 %v1189
        %1498 = vmatprep.subr.bf16.mxu0 %v1193
        %1499 = vmatpush1.bf16.msra.mxu0 %v1192
        %1500 = vmatprep.subr.bf16.mxu0 %v1196
        %1501 = vmatpush1.bf16.msra.mxu0 %v1195
        %1502 = vmatprep.subr.bf16.mxu0 %v1199
        %1503 = vmatpush1.bf16.msra.mxu0 %v1198
        %1504 = vmatprep.subr.bf16.mxu0 %v1202
        %1505 = vmatpush1.bf16.msra.mxu0 %v1201
        %1506 = vmatprep.subr.bf16.mxu0 %v1205
        %1507 = vmatpush1.bf16.msra.mxu0 %v1204
        %1508 = vmatprep.subr.bf16.mxu0 %v1208
        %1509 = vmatpush1.bf16.msra.mxu0 %v1207
        %1510 = vmatprep.subr.bf16.mxu0 %v1211
        %1511 = vmatpush1.bf16.msra.mxu0 %v1210
        %1512 = vmatprep.subr.bf16.mxu0 %v1214
        %1513 = vmatpush1.bf16.msra.mxu0 %v1213
        %1514 = vmatprep.mubr.bf16.mxu0 %v561
        %1515 = vmatmul.mubr.bf16.gmra.mrb[0].mxu0 %v560
        %v1516 = vpop.f32.mrb[0].mxu0
        %v1517 = vadd.f32 %v1456, %v1516
        %v1518 = vpop.f32.mrb[0].mxu0
        %v1519 = vadd.f32 %v1458, %v1518
        %v1520 = vpop.f32.mrb[0].mxu0
        %v1521 = vadd.f32 %v1460, %v1520
        %v1522 = vpop.f32.mrb[0].mxu0
        %v1523 = vadd.f32 %v1462, %v1522
        %1524 = vmatprep.mubr.bf16.mxu0 %v567
        %1525 = vmatmul.mubr.bf16.gmra.mrb[0].mxu0 %v566
        %v1526 = vpop.f32.mrb[0].mxu0
        %v1527 = vadd.f32 %v1466, %v1526
        %v1528 = vpop.f32.mrb[0].mxu0
        %v1529 = vadd.f32 %v1468, %v1528
        %v1530 = vpop.f32.mrb[0].mxu0
        %v1531 = vadd.f32 %v1470, %v1530
        %v1532 = vpop.f32.mrb[0].mxu0
        %v1533 = vadd.f32 %v1472, %v1532
        %1534 = vmatprep.mubr.bf16.mxu0 %v573
        %1535 = vmatmul.mubr.bf16.gmra.mrb[0].mxu0 %v572
        %v1536 = vpop.f32.mrb[0].mxu0
        %v1537 = vadd.f32 %v1476, %v1536
        %v1538 = vpop.f32.mrb[0].mxu0
        %v1539 = vadd.f32 %v1478, %v1538
        %v1540 = vpop.f32.mrb[0].mxu0
        %v1541 = vpop.f32.mrb[0].mxu0
        %1542 = vdwg.mxu0
        %1543 = vmatprep.subr.bf16.mxu0 0
        %1544 = vmatpush1.bf16.msra.mxu0 %v1074
        %1545 = vmatprep.subr.bf16.mxu0 0
        %1546 = vmatpush1.bf16.msra.mxu0 %v1077
        %1547 = vmatprep.subr.bf16.mxu0 0
        %1548 = vmatpush1.bf16.msra.mxu0 %v1080
        %1549 = vmatprep.subr.bf16.mxu0 0
        %1550 = vmatpush1.bf16.msra.mxu0 %v1083
        %1551 = vmatprep.subr.bf16.mxu0 0
        %1552 = vmatpush1.bf16.msra.mxu0 %v1086
        %1553 = vmatprep.subr.bf16.mxu0 0
        %1554 = vmatpush1.bf16.msra.mxu0 %v1089
        %1555 = vmatprep.subr.bf16.mxu0 0
        %1556 = vmatpush1.bf16.msra.mxu0 %v1092
        %1557 = vmatprep.subr.bf16.mxu0 0
        %1558 = vmatpush1.bf16.msra.mxu0 %v1095
        %1559 = vmatprep.subr.bf16.mxu0 0
        %1560 = vmatpush1.bf16.msra.mxu0 %v1098
        %1561 = vmatprep.subr.bf16.mxu0 0
        %1562 = vmatpush1.bf16.msra.mxu0 %v1101
        %1563 = vmatprep.subr.bf16.mxu0 0
        %1564 = vmatpush1.bf16.msra.mxu0 %v1104
        %1565 = vmatprep.subr.bf16.mxu0 0
        %1566 = vmatpush1.bf16.msra.mxu0 %v1107
        %1567 = vmatprep.subr.bf16.mxu0 0
        %1568 = vmatpush1.bf16.msra.mxu0 %v1110
        %1569 = vmatprep.subr.bf16.mxu0 0
        %1570 = vmatpush1.bf16.msra.mxu0 %v1113
        %1571 = vmatprep.subr.bf16.mxu0 0
        %1572 = vmatpush1.bf16.msra.mxu0 %v1116
        %1573 = vmatprep.subr.bf16.mxu0 0
        %1574 = vmatpush1.bf16.msra.mxu0 %v1119
        %1575 = vmatprep.mubr.bf16.mxu0 %v557
        %1576 = vmatmul.mubr.bf16.gmra.mrb[0].mxu0 %v556
        %v1577 = vpop.f32.mrb[0].mxu0
        %v1578 = vadd.f32 0.0, %v1577
        %v1579 = vpop.f32.mrb[0].mxu0
        %v1580 = vpop.f32.mrb[0].mxu0
        %v1581 = vadd.f32 0.0, %v1580
        %v1582 = vpop.f32.mrb[0].mxu0
        %1583 = vmatprep.mubr.bf16.mxu0 %v563
        %1584 = vmatmul.mubr.bf16.gmra.mrb[0].mxu0 %v562
        %v1585 = vpop.f32.mrb[0].mxu0
        %v1586 = vadd.f32 0.0, %v1585
        %v1587 = vpop.f32.mrb[0].mxu0
        %v1588 = vpop.f32.mrb[0].mxu0
        %v1589 = vadd.f32 0.0, %v1588
        %v1590 = vpop.f32.mrb[0].mxu0
        %1591 = vmatprep.mubr.bf16.mxu0 %v569
        %1592 = vmatmul.mubr.bf16.gmra.mrb[0].mxu0 %v568
        %v1593 = vpop.f32.mrb[0].mxu0
        %v1594 = vadd.f32 0.0, %v1593
        %v1595 = vpop.f32.mrb[0].mxu0
        %v1596 = vpop.f32.mrb[0].mxu0
        %v1597 = vpop.f32.mrb[0].mxu0
        %1598 = vdwg.mxu0
        %1599 = vmatprep.subr.bf16.mxu0 0
        %1600 = vmatpush1.bf16.msra.mxu0 %v1122
        %1601 = vmatprep.subr.bf16.mxu0 0
        %1602 = vmatpush1.bf16.msra.mxu0 %v1125
        %1603 = vmatprep.subr.bf16.mxu0 0
        %1604 = vmatpush1.bf16.msra.mxu0 %v1128
        %1605 = vmatprep.subr.bf16.mxu0 0
        %1606 = vmatpush1.bf16.msra.mxu0 %v1131
        %1607 = vmatprep.subr.bf16.mxu0 0
        %1608 = vmatpush1.bf16.msra.mxu0 %v1134
        %1609 = vmatprep.subr.bf16.mxu0 0
        %1610 = vmatpush1.bf16.msra.mxu0 %v1137
        %1611 = vmatprep.subr.bf16.mxu0 0
        %1612 = vmatpush1.bf16.msra.mxu0 %v1140
        %1613 = vmatprep.subr.bf16.mxu0 0
        %1614 = vmatpush1.bf16.msra.mxu0 %v1143
        %1615 = vmatprep.subr.bf16.mxu0 0
        %1616 = vmatpush1.bf16.msra.mxu0 %v1146
        %1617 = vmatprep.subr.bf16.mxu0 0
        %1618 = vmatpush1.bf16.msra.mxu0 %v1149
        %1619 = vmatprep.subr.bf16.mxu0 0
        %1620 = vmatpush1.bf16.msra.mxu0 %v1152
        %1621 = vmatprep.subr.bf16.mxu0 0
        %1622 = vmatpush1.bf16.msra.mxu0 %v1155
        %1623 = vmatprep.subr.bf16.mxu0 0
        %1624 = vmatpush1.bf16.msra.mxu0 %v1158
        %1625 = vmatprep.subr.bf16.mxu0 0
        %1626 = vmatpush1.bf16.msra.mxu0 %v1161
        %1627 = vmatprep.subr.bf16.mxu0 0
        %1628 = vmatpush1.bf16.msra.mxu0 %v1164
        %1629 = vmatprep.subr.bf16.mxu0 0
        %1630 = vmatpush1.bf16.msra.mxu0 %v1167
        %1631 = vmatprep.mubr.bf16.mxu0 %v559
        %1632 = vmatmul.mubr.bf16.gmra.mrb[0].mxu0 %v558
        %v1633 = vpop.f32.mrb[0].mxu0
        %v1634 = vadd.f32 %v1578, %v1633
        %v1635 = vpop.f32.mrb[0].mxu0
        %v1636 = vpop.f32.mrb[0].mxu0
        %v1637 = vadd.f32 %v1581, %v1636
        %v1638 = vpop.f32.mrb[0].mxu0
        %1639 = vmatprep.mubr.bf16.mxu0 %v565
        %1640 = vmatmul.mubr.bf16.gmra.mrb[0].mxu0 %v564
        %v1641 = vpop.f32.mrb[0].mxu0
        %v1642 = vadd.f32 %v1586, %v1641
        %v1643 = vpop.f32.mrb[0].mxu0
        %v1644 = vpop.f32.mrb[0].mxu0
        %v1645 = vadd.f32 %v1589, %v1644
        %v1646 = vpop.f32.mrb[0].mxu0
        %1647 = vmatprep.mubr.bf16.mxu0 %v571
        %1648 = vmatmul.mubr.bf16.gmra.mrb[0].mxu0 %v570
        %v1649 = vpop.f32.mrb[0].mxu0
        %v1650 = vadd.f32 %v1594, %v1649
        %v1651 = vpop.f32.mrb[0].mxu0
        %v1652 = vpop.f32.mrb[0].mxu0
        %v1653 = vpop.f32.mrb[0].mxu0
        %1654 = vdwg.mxu0
        %1655 = vmatprep.subr.bf16.mxu0 0
        %1656 = vmatpush1.bf16.msra.mxu0 %v1170
        %1657 = vmatprep.subr.bf16.mxu0 0
        %1658 = vmatpush1.bf16.msra.mxu0 %v1173
        %1659 = vmatprep.subr.bf16.mxu0 0
        %1660 = vmatpush1.bf16.msra.mxu0 %v1176
        %1661 = vmatprep.subr.bf16.mxu0 0
        %1662 = vmatpush1.bf16.msra.mxu0 %v1179
        %1663 = vmatprep.subr.bf16.mxu0 0
        %1664 = vmatpush1.bf16.msra.mxu0 %v1182
        %1665 = vmatprep.subr.bf16.mxu0 0
        %1666 = vmatpush1.bf16.msra.mxu0 %v1185
        %1667 = vmatprep.subr.bf16.mxu0 0
        %1668 = vmatpush1.bf16.msra.mxu0 %v1188
        %1669 = vmatprep.subr.bf16.mxu0 0
        %1670 = vmatpush1.bf16.msra.mxu0 %v1191
        %1671 = vmatprep.subr.bf16.mxu0 0
        %1672 = vmatpush1.bf16.msra.mxu0 %v1194
        %1673 = vmatprep.subr.bf16.mxu0 0
        %1674 = vmatpush1.bf16.msra.mxu0 %v1197
        %1675 = vmatprep.subr.bf16.mxu0 0
        %1676 = vmatpush1.bf16.msra.mxu0 %v1200
        %1677 = vmatprep.subr.bf16.mxu0 0
        %1678 = vmatpush1.bf16.msra.mxu0 %v1203
        %1679 = vmatprep.subr.bf16.mxu0 0
        %1680 = vmatpush1.bf16.msra.mxu0 %v1206
        %1681 = vmatprep.subr.bf16.mxu0 0
        %1682 = vmatpush1.bf16.msra.mxu0 %v1209
        %1683 = vmatprep.subr.bf16.mxu0 0
        %1684 = vmatpush1.bf16.msra.mxu0 %v1212
        %1685 = vmatprep.subr.bf16.mxu0 0
        %1686 = vmatpush1.bf16.msra.mxu0 %v1215
        %1687 = vmatprep.mubr.bf16.mxu0 %v561
        %1688 = vmatmul.mubr.bf16.gmra.mrb[0].mxu0 %v560
        %v1689 = vpop.f32.mrb[0].mxu0
        %v1690 = vadd.f32 %v1634, %v1689
        %v1691 = vpop.f32.mrb[0].mxu0
        %v1692 = vpop.f32.mrb[0].mxu0
        %v1693 = vadd.f32 %v1637, %v1692
        %v1694 = vpop.f32.mrb[0].mxu0
        %1695 = vmatprep.mubr.bf16.mxu0 %v567
        %1696 = vmatmul.mubr.bf16.gmra.mrb[0].mxu0 %v566
        %v1697 = vpop.f32.mrb[0].mxu0
        %v1698 = vadd.f32 %v1642, %v1697
        %v1699 = vpop.f32.mrb[0].mxu0
        %v1700 = vpop.f32.mrb[0].mxu0
        %v1701 = vadd.f32 %v1645, %v1700
        %v1702 = vpop.f32.mrb[0].mxu0
        %1703 = vmatprep.mubr.bf16.mxu0 %v573
        %1704 = vmatmul.mubr.bf16.gmra.mrb[0].mxu0 %v572
        %v1705 = vpop.f32.mrb[0].mxu0
        %v1706 = vadd.f32 %v1650, %v1705
        %v1707 = vpop.f32.mrb[0].mxu0
        %v1708 = vpop.f32.mrb[0].mxu0
        %v1709 = vpop.f32.mrb[0].mxu0
        %1710 = vdwg.mxu0
        %v1711 = vadd.f32 %v289, %v1517
        %v1712 = vadd.f32 %v290, %v1519
        %v1713 = vadd.f32 %v291, %v1690
        %v1714 = vadd.f32 %v292, %v1521
        %v1715 = vadd.f32 %v293, %v1523
        %v1716 = vadd.f32 %v294, %v1693
        %v1717 = vadd.f32 %v295, %v1527
        %v1718 = vadd.f32 %v296, %v1529
        %v1719 = vadd.f32 %v297, %v1698
        %v1720 = vadd.f32 %v298, %v1531
        %v1721 = vadd.f32 %v299, %v1533
        %v1722 = vadd.f32 %v300, %v1701
        %v1723 = vadd.f32 %v301, %v1537
        %v1724 = vadd.f32 %v302, %v1539
        %v1725 = vadd.f32 %v303, %v1706
        %1726 = vst [vmem:[#allocation2] sm:$0xff] %v1711
        %1727 = vst [vmem:[#allocation2 + $0x8] sm:$0xff] %v1712
        %1728 = vst [vmem:[#allocation2 + $0x10] sm:$0xff] %v1713
        %1729 = vst [vmem:[#allocation2 + $0x18] sm:$0xff] %v1714
        %1730 = vst [vmem:[#allocation2 + $0x20] sm:$0xff] %v1715
        %1731 = vst [vmem:[#allocation2 + $0x28] sm:$0xff] %v1716
        %1732 = vst [vmem:[#allocation2 + $0x30] sm:$0xff] %v1717
        %1733 = vst [vmem:[#allocation2 + $0x38] sm:$0xff] %v1718
        %1734 = vst [vmem:[#allocation2 + $0x40] sm:$0xff] %v1719
        %1735 = vst [vmem:[#allocation2 + $0x48] sm:$0xff] %v1720
        %1736 = vst [vmem:[#allocation2 + $0x50] sm:$0xff] %v1721
        %1737 = vst [vmem:[#allocation2 + $0x58] sm:$0xff] %v1722
        %1738 = vst [vmem:[#allocation2 + $0x60] sm:$0xff] %v1723
        %1739 = vst [vmem:[#allocation2 + $0x68] sm:$0xff] %v1724
        %1740 = vst [vmem:[#allocation2 + $0x70] sm:$0xff] %v1725
        // Predicated region
        $region49: #{tpu_custom_call.1} parent=31 // pred_check
          %p1741 = pneg %p270
        $region50: #{tpu_custom_call.1} parent=31 // pred_check_branch
          %1743 = sbr.rel (%p1741) target = $region52
        $region51: #{tpu_custom_call.1} parent=31 // pred_region
          %v1744 = vld [vmem:[#allocation2] sm:$0xff]
          %v1745 = vld [vmem:[#allocation2 + $0x8] sm:$0xff]
          %v1746 = vld [vmem:[#allocation2 + $0x10] sm:$0xff]
          %v1747 = vld [vmem:[#allocation2 + $0x18] sm:$0xff]
          %v1748 = vld [vmem:[#allocation2 + $0x20] sm:$0xff]
          %v1749 = vld [vmem:[#allocation2 + $0x28] sm:$0xff]
          %v1750 = vld [vmem:[#allocation2 + $0x30] sm:$0xff]
          %v1751 = vld [vmem:[#allocation2 + $0x38] sm:$0xff]
          %v1752 = vld [vmem:[#allocation2 + $0x40] sm:$0xff]
          %v1753 = vld [vmem:[#allocation2 + $0x48] sm:$0xff]
          %v1754 = vld [vmem:[#allocation2 + $0x50] sm:$0xff]
          %v1755 = vld [vmem:[#allocation2 + $0x58] sm:$0xff]
          %v1756 = vld [vmem:[#allocation2 + $0x60] sm:$0xff]
          %v1757 = vld [vmem:[#allocation2 + $0x68] sm:$0xff]
          %v1758 = vld [vmem:[#allocation2 + $0x70] sm:$0xff]
          %v1759 = vld [vmem:[%s236] sm:$0x7]
          %v1761 = vlaneseq
          %v1762 = vshrl.u32 %v1761, 7
          %v1763 = vsub.s32 0, %v1762
          %v1764 = vrot.slane %v1759, %v1763
          %v1765 = vlaneseq
          %v1766 = vshrl.u32 %v1765, 7
          %v1767 = vsub.s32 1, %v1766
          %v1768 = vrot.slane %v1759, %v1767
          %v1769 = vlaneseq
          %v1770 = vshrl.u32 %v1769, 7
          %v1771 = vsub.s32 2, %v1770
          %v1772 = vrot.slane %v1759, %v1771
          %v1776 = vadd.f32 %v1744, %v1764
          %v1777 = vadd.f32 %v1745, %v1768
          %v1778 = vadd.f32 %v1746, %v1772
          %v1779 = vadd.f32 %v1747, %v1764
          %v1780 = vadd.f32 %v1748, %v1768
          %v1781 = vadd.f32 %v1749, %v1772
          %v1782 = vadd.f32 %v1750, %v1764
          %v1783 = vadd.f32 %v1751, %v1768
          %v1784 = vadd.f32 %v1752, %v1772
          %v1785 = vadd.f32 %v1753, %v1764
          %v1786 = vadd.f32 %v1754, %v1768
          %v1787 = vadd.f32 %v1755, %v1772
          %v1788 = vadd.f32 %v1756, %v1764
          %v1789 = vadd.f32 %v1757, %v1768
          %v1790 = vadd.f32 %v1758, %v1772
          %1791 = vst [vmem:[%s263] sm:$0xff] %v1776
          %1792 = vst [vmem:[%s263 + $0x8] sm:$0xff] %v1777
          %1793 = vst [vmem:[%s263 + $0x10] sm:$0xff] %v1778
          %1794 = vst [vmem:[%s263 + $0x18] sm:$0xff] %v1779
          %1795 = vst [vmem:[%s263 + $0x20] sm:$0xff] %v1780
          %1796 = vst [vmem:[%s263 + $0x28] sm:$0xff] %v1781
          %1797 = vst [vmem:[%s263 + $0x30] sm:$0xff] %v1782
          %1798 = vst [vmem:[%s263 + $0x38] sm:$0xff] %v1783
          %1799 = vst [vmem:[%s263 + $0x40] sm:$0xff] %v1784
          %1800 = vst [vmem:[%s263 + $0x48] sm:$0xff] %v1785
          %1801 = vst [vmem:[%s263 + $0x50] sm:$0xff] %v1786
          %1802 = vst [vmem:[%s263 + $0x58] sm:$0xff] %v1787
          %1803 = vst [vmem:[%s263 + $0x60] sm:$0xff] %v1788
          %1804 = vst [vmem:[%s263 + $0x68] sm:$0xff] %v1789
          %1805 = vst [vmem:[%s263 + $0x70] sm:$0xff] %v1790
        $region52: #{tpu_custom_call.1} parent=31 // pred_fallthru
          _
        %s1806 = sand.u32 %s121, 1
        %s1807 = scalar_lea.sflag [#allocation5], %s1806
        %s1808 = sand.u32 %s121, 1
        %s1809 = smul.addr %s1808, 120
        %s1810 = scalar_lea.vmem [#allocation9], %s1809
        // Predicated region
        $region53: #{tpu_custom_call.1} parent=31 // pred_check
          %p1811 = pneg %p131
        $region54: #{tpu_custom_call.1} parent=31 // pred_check_branch
          %1813 = sbr.rel (%p1811) target = $region56
        $region55: #{tpu_custom_call.1} parent=31 // pred_region
          %s1814 = smul.u32 3, %s25
          %s1816 = ssub.s32 1920, 1920
          %1817 = vsyncadd %s1807, %s1816
          %s1818 = smul.addr %s1814, 128
          %s1819 = scalar_lea.hbm %s3, %s1818
          %s1820 = sshll.u32 %s1810, 4
          %s1821 = int_to_ptr.vmem [resolvable:$true] %s1820
          %1826 = dma.vmem_to_hbm [thread:$0]  %s1821, 1920, %s1819, %s1807, 384, 768, 24
        $region56: #{tpu_custom_call.1} parent=31 // pred_fallthru
          _
      $region32: #{tpu_custom_call.1} parent=5 // pred_fallthru
        _
      %p1827 = scmp.le.s32.totalorder 2, %s16
      // Predicated region
      $region57: #{tpu_custom_call.1} parent=5 // pred_check
        %p1828 = pneg %p1827
      $region58: #{tpu_custom_call.1} parent=5 // pred_check_branch
        %1830 = sbr.rel (%p1828) target = $region60
      $region59: #{tpu_custom_call.1} parent=5 // pred_region
        %s1831 = ssub.s32 %s16, 2
        // Predicated region
        $region61: #{tpu_custom_call.1} parent=59 // pred_check
          %p1832 = pneg %p137
        $region62: #{tpu_custom_call.1} parent=59 // pred_check_branch
          %1834 = sbr.rel (%p1832) target = $region64
        $region63: #{tpu_custom_call.1} parent=59 // pred_region
          %s1835 = sand.u32 %s122, 1
          %s1836 = scalar_lea.sflag [#allocation5], %s1835
          %s1837 = sand.u32 %s122, 1
          %s1838 = smul.addr %s1837, 120
          %s1839 = scalar_lea.vmem [#allocation9], %s1838
          %1840 = dma.done %s1836, 1920
        $region64: #{tpu_custom_call.1} parent=59 // pred_fallthru
          _
      $region60: #{tpu_custom_call.1} parent=5 // pred_fallthru
        _
    $region6: #{tpu_custom_call.1} parent=1 // loop_footer
      %s20 = sadd.s32 1, %s16
    $region7: #{tpu_custom_call.1} parent=1 // loop_footer_branch
      %15 = sbr.rel target = $region3
    $region8: #{tpu_custom_call.1} parent=1 // loop_exit
      _
    %1841 = vsyncpa [#allocation4], 1
    %s1842 = scalar_lea.sflag [#allocation4], 1
    %1843 = vsyncpa %s1842, 1
    %1844 = vsyncpa [#allocation7], 1
    %s1845 = scalar_lea.sflag [#allocation7], 1
    %1846 = vsyncpa %s1845, 1
    %1847 = vsyncpa [#allocation5], 1
    %s1848 = scalar_lea.sflag [#allocation5], 1
    %1849 = vsyncpa %s1848, 1

</llo_original>
